<compile_context>
chip_gen: v7x
topology: tpu7x:2x2x1
jax: 0.10.0
libtpu: 0.0.40
codegen_flags: <defaults>
</compile_context>

<pallas_src>
import functools
import math

import jax
import jax.numpy as jnp
from jax.experimental import pallas as pl
from jax.experimental.pallas import tpu as pltpu


CONFIG = dict(
    vocab_size=50,
    type_vocab_size=2,
    max_position=16,
    hidden=32,
    heads=2,
    layers=2,
    intermediate=64,
)

_LN_EPS = 1e-12


# ----------------------------- in-kernel helpers ----------------------------

def _layer_norm(x, g, b, eps=_LN_EPS):
    mu = jnp.mean(x, axis=-1, keepdims=True)
    var = jnp.mean((x - mu) * (x - mu), axis=-1, keepdims=True)
    return (x - mu) * jax.lax.rsqrt(var + eps) * g + b


def _gelu(x):
    c = math.sqrt(2.0 / math.pi)
    return 0.5 * x * (1.0 + jnp.tanh(c * (x + 0.044715 * x * x * x)))


# ------------------------------- fused kernel -------------------------------

def _bert_layer_kernel(emb_ref, bias_ref, eg_ref, eb_ref,
                       wqkv_ref, bqkv_ref, wo_ref, bo_ref,
                       ln1g_ref, ln1b_ref, wi_ref, bi_ref,
                       wo2_ref, bo2_ref, ln2g_ref, ln2b_ref,
                       out_ref, h_ref,
                       *, S, H, nH, Dh):
    """One (batch element, encoder layer) grid step; h carried in VMEM scratch."""
    layer = pl.program_id(1)

    # Embedding LayerNorm initializes the carried hidden state at layer 0.
    @pl.when(layer == 0)
    def _():
        h_ref[...] = _layer_norm(emb_ref[...], eg_ref[...], eb_ref[...])

    h = h_ref[...]                                              # (S, H) f32
    x16 = h.astype(jnp.bfloat16)

    # --- fused QKV projection: one bf16 MXU matmul, f32 accumulation ---
    qkv = jnp.dot(x16, wqkv_ref[...],
                  preferred_element_type=jnp.float32) + bqkv_ref[...]   # (S, 3H)

    scale = 1.0 / math.sqrt(Dh)
    neg_bias = jnp.broadcast_to(bias_ref[...], (S, S))          # hoisted once

    # --- multi-head self-attention, per-head contexts kept in registers ---
    ctx_heads = []
    for hd in range(nH):                                        # nH static
        c0 = hd * Dh
        q = (qkv[:, c0:c0 + Dh] * scale).astype(jnp.bfloat16)   # scale folded in
        k = qkv[:, H + c0:H + c0 + Dh].astype(jnp.bfloat16)
        v = qkv[:, 2 * H + c0:2 * H + c0 + Dh].astype(jnp.bfloat16)
        # contract last dims directly: no k.T materialization
        s = jax.lax.dot_general(q, k, (((1,), (1,)), ((), ())),
                                preferred_element_type=jnp.float32)     # (S, S)
        s = s + neg_bias
        s = s - jnp.max(s, axis=-1, keepdims=True)
        p = jnp.exp(s)
        p = p * pl.reciprocal(jnp.sum(p, axis=-1, keepdims=True), approx=True)
        ctx_heads.append(jnp.dot(p.astype(jnp.bfloat16), v,
                                 preferred_element_type=jnp.float32))   # (S, Dh)
    ctx = jnp.concatenate(ctx_heads, axis=-1)                   # (S, H), registers

    # --- output projection + Add&LayerNorm ---
    attn = jnp.dot(ctx.astype(jnp.bfloat16), wo_ref[...],
                   preferred_element_type=jnp.float32) + bo_ref[...]
    h = _layer_norm(attn + h, ln1g_ref[...], ln1b_ref[...])

    # --- FFN (GELU) + Add&LayerNorm ---
    inter = jnp.dot(h.astype(jnp.bfloat16), wi_ref[...],
                    preferred_element_type=jnp.float32) + bi_ref[...]
    inter = _gelu(inter)
    ffn = jnp.dot(inter.astype(jnp.bfloat16), wo2_ref[...],
                  preferred_element_type=jnp.float32) + bo2_ref[...]
    h = _layer_norm(ffn + h, ln2g_ref[...], ln2b_ref[...])

    h_ref[...] = h                                              # carry to next layer

    @pl.when(layer == pl.num_programs(1) - 1)
    def _():
        out_ref[...] = h.astype(out_ref.dtype)


def bert_forward_fused(emb, neg_bias, params, cfg):
    """emb: (B, S, H) summed embeddings (f32); neg_bias: (B, 1, S) additive mask."""
    B, S, H = emb.shape
    nH, L, I = cfg["heads"], cfg["layers"], cfg["intermediate"]
    assert H % nH == 0
    Dh = H // nH

    kernel = functools.partial(_bert_layer_kernel, S=S, H=H, nH=nH, Dh=Dh)

    per_batch = lambda b, l: (b, 0, 0)       # noqa: E731
    per_layer = lambda b, l: (l, 0, 0)       # noqa: E731
    shared = lambda b, l: (0, 0)             # noqa: E731

    return pl.pallas_call(
        kernel,
        grid=(B, L),
        in_specs=[
            pl.BlockSpec((None, S, H), per_batch),       # emb
            pl.BlockSpec((None, 1, S), per_batch),       # additive mask bias
            pl.BlockSpec((1, H), shared),                # emb_ln_g
            pl.BlockSpec((1, H), shared),                # emb_ln_b
            pl.BlockSpec((None, H, 3 * H), per_layer),   # wqkv (bf16)
            pl.BlockSpec((None, 1, 3 * H), per_layer),   # bqkv
            pl.BlockSpec((None, H, H), per_layer),       # wo (bf16)
            pl.BlockSpec((None, 1, H), per_layer),       # bo
            pl.BlockSpec((None, 1, H), per_layer),       # ln1_g
            pl.BlockSpec((None, 1, H), per_layer),       # ln1_b
            pl.BlockSpec((None, H, I), per_layer),       # wi (bf16)
            pl.BlockSpec((None, 1, I), per_layer),       # bi
            pl.BlockSpec((None, I, H), per_layer),       # wo2 (bf16)
            pl.BlockSpec((None, 1, H), per_layer),       # bo2
            pl.BlockSpec((None, 1, H), per_layer),       # ln2_g
            pl.BlockSpec((None, 1, H), per_layer),       # ln2_b
        ],
        out_specs=pl.BlockSpec((None, S, H), per_batch),
        out_shape=jax.ShapeDtypeStruct((B, S, H), jnp.float32),
        scratch_shapes=[pltpu.VMEM((S, H), jnp.float32)],  # carried hidden state
        compiler_params=pltpu.CompilerParams(
            dimension_semantics=("parallel", "arbitrary"),  # batch || , layers seq
            vmem_limit_bytes=32 * 1024 * 1024,              # safe on v5e/v6e/v7x
        ),
    )(emb, neg_bias,
      params["emb_ln_g"], params["emb_ln_b"],
      params["wqkv"], params["bqkv"],
      params["wo"], params["bo"],
      params["ln1_g"], params["ln1_b"],
      params["wi"], params["bi"],
      params["wo2"], params["bo2"],
      params["ln2_g"], params["ln2_b"])


# ------------------------------ model definition ----------------------------

def init_params(key, cfg):
    H, I, L = cfg["hidden"], cfg["intermediate"], cfg["layers"]
    ks = jax.random.split(key, 8)

    def norm(k, shape, dtype=jnp.float32):
        return (0.02 * jax.random.normal(k, shape, dtype=jnp.float32)).astype(dtype)

    return {
        "word_emb": norm(ks[0], (cfg["vocab_size"], H)),
        "pos_emb": norm(ks[1], (cfg["max_position"], H)),
        "type_emb": norm(ks[2], (cfg["type_vocab_size"], H)),
        "emb_ln_g": jnp.ones((1, H), jnp.float32),
        "emb_ln_b": jnp.zeros((1, H), jnp.float32),
        # per-layer weights stacked along a leading L axis; Q/K/V merged.
        # Matmul weights are bf16 (MXU operands); biases / LN params stay f32.
        "wqkv": norm(ks[3], (L, H, 3 * H), jnp.bfloat16),
        "bqkv": jnp.zeros((L, 1, 3 * H), jnp.float32),
        "wo": norm(ks[4], (L, H, H), jnp.bfloat16),
        "bo": jnp.zeros((L, 1, H), jnp.float32),
        "ln1_g": jnp.ones((L, 1, H), jnp.float32),
        "ln1_b": jnp.zeros((L, 1, H), jnp.float32),
        "wi": norm(ks[5], (L, H, I), jnp.bfloat16),
        "bi": jnp.zeros((L, 1, I), jnp.float32),
        "wo2": norm(ks[6], (L, I, H), jnp.bfloat16),
        "bo2": jnp.zeros((L, 1, H), jnp.float32),
        "ln2_g": jnp.ones((L, 1, H), jnp.float32),
        "ln2_b": jnp.zeros((L, 1, H), jnp.float32),
    }


def language_embedding_forward(params, sentences, bert_sent, bert_sent_type,
                               bert_sent_mask, cfg=CONFIG):
    """Mirrors LanguageEmbeddingLayer.forward: returns last hidden state
    (batch, seq, hidden). `sentences` is unused (as in the module)."""
    del sentences
    B, S = bert_sent.shape

    # TODO(synk): embedding row gather kept in plain JAX (jit-fused around the
    # kernel); a scalar-prefetch + pl.Element gather could fold it in-kernel.
    word = jnp.take(params["word_emb"], bert_sent, axis=0)            # (B,S,H)
    typ = jnp.take(params["type_emb"], bert_sent_type, axis=0)        # (B,S,H)
    pos = params["pos_emb"][:S][None, :, :]                           # (1,S,H)
    emb = word + pos + typ                                            # (B,S,H)

    mask = bert_sent_mask.astype(jnp.float32)
    neg_bias = ((1.0 - mask) * -1e9)[:, None, :]                      # (B,1,S)

    return bert_forward_fused(emb, neg_bias, params, cfg)             # (B,S,H)


# ----------------------------------- main -----------------------------------

if __name__ == "__main__":
    cfg = CONFIG
    B, S = 2, 8
    key = jax.random.PRNGKey(0)
    k_param, k_ids, k_type = jax.random.split(key, 3)

    params = init_params(k_param, cfg)

    bert_sent = jax.random.randint(k_ids, (B, S), 0, cfg["vocab_size"],
                                   dtype=jnp.int32)
    bert_sent_type = jax.random.randint(k_type, (B, S), 0,
                                        cfg["type_vocab_size"], dtype=jnp.int32)
    # batch 0 fully valid, batch 1 has two padded tokens at the end
    bert_sent_mask = jnp.array(
        [[1] * S, [1] * (S - 2) + [0, 0]], dtype=jnp.float32)
    sentences = None  # unused by the module's forward

    fwd = jax.jit(lambda p, ids, tids, m: language_embedding_forward(
        p, None, ids, tids, m, cfg))
    out = fwd(params, bert_sent, bert_sent_type, bert_sent_mask)
    out = jax.block_until_ready(out)

    assert out.shape == (B, S, cfg["hidden"])
    assert out.dtype == jnp.float32
    assert bool(jnp.all(jnp.isfinite(out)))
    print("KERNEL_OK")
</pallas_src>

<mosaic_0001>
module attributes {stable_mosaic.version = 11 : i64} {
  func.func @_bert_layer_kernel(%arg0: i32, %arg1: i32, %arg2: memref<1x8x32xf32, #tpu.memory_space<vmem>>, %arg3: memref<1x1x8xf32, #tpu.memory_space<vmem>>, %arg4: memref<1x32xf32, #tpu.memory_space<vmem>>, %arg5: memref<1x32xf32, #tpu.memory_space<vmem>>, %arg6: memref<1x32x96xbf16, #tpu.memory_space<vmem>>, %arg7: memref<1x1x96xf32, #tpu.memory_space<vmem>>, %arg8: memref<1x32x32xbf16, #tpu.memory_space<vmem>>, %arg9: memref<1x1x32xf32, #tpu.memory_space<vmem>>, %arg10: memref<1x1x32xf32, #tpu.memory_space<vmem>>, %arg11: memref<1x1x32xf32, #tpu.memory_space<vmem>>, %arg12: memref<1x32x64xbf16, #tpu.memory_space<vmem>>, %arg13: memref<1x1x64xf32, #tpu.memory_space<vmem>>, %arg14: memref<1x64x32xbf16, #tpu.memory_space<vmem>>, %arg15: memref<1x1x32xf32, #tpu.memory_space<vmem>>, %arg16: memref<1x1x32xf32, #tpu.memory_space<vmem>>, %arg17: memref<1x1x32xf32, #tpu.memory_space<vmem>>, %arg18: memref<1x8x32xf32, #tpu.memory_space<vmem>>, %arg19: memref<8x32xf32, #tpu.memory_space<vmem>>) attributes {dimension_semantics = [#tpu.dimension_semantics<parallel>, #tpu.dimension_semantics<arbitrary>], iteration_bounds = array<i64: 2, 2>, scalar_prefetch = 0 : i64, scratch_operands = 1 : i64, tpu.core_type = #tpu.core_type<tc>, window_params = [{transform_indices = @transform_0, window_bounds = array<i64: 1, 8, 32>}, {transform_indices = @transform_1, window_bounds = array<i64: 1, 1, 8>}, {pipeline_mode = #tpu.pipeline_mode<synchronous>, transform_indices = @transform_2, window_bounds = array<i64: 1, 32>}, {pipeline_mode = #tpu.pipeline_mode<synchronous>, transform_indices = @transform_3, window_bounds = array<i64: 1, 32>}, {transform_indices = @transform_4, window_bounds = array<i64: 1, 32, 96>}, {transform_indices = @transform_5, window_bounds = array<i64: 1, 1, 96>}, {transform_indices = @transform_6, window_bounds = array<i64: 1, 32, 32>}, {transform_indices = @transform_7, window_bounds = array<i64: 1, 1, 32>}, {transform_indices = @transform_8, window_bounds = array<i64: 1, 1, 32>}, {transform_indices = @transform_9, window_bounds = array<i64: 1, 1, 32>}, {transform_indices = @transform_10, window_bounds = array<i64: 1, 32, 64>}, {transform_indices = @transform_11, window_bounds = array<i64: 1, 1, 64>}, {transform_indices = @transform_12, window_bounds = array<i64: 1, 64, 32>}, {transform_indices = @transform_13, window_bounds = array<i64: 1, 1, 32>}, {transform_indices = @transform_14, window_bounds = array<i64: 1, 1, 32>}, {transform_indices = @transform_15, window_bounds = array<i64: 1, 1, 32>}, {transform_indices = @transform_16, window_bounds = array<i64: 1, 8, 32>}]} {
    %c0_i32 = arith.constant 0 : i32
    %0 = arith.cmpi eq, %arg1, %c0_i32 : i32
    %1 = arith.extui %0 : i1 to i32
    %c0_i32_0 = arith.constant 0 : i32
    %2 = arith.cmpi ne, %1, %c0_i32_0 : i32
    scf.if %2 {
      %c0_71 = arith.constant 0 : index
      %c0_72 = arith.constant 0 : index
      %c0_73 = arith.constant 0 : index
      %160 = vector.load %arg2[%c0_71, %c0_72, %c0_73] : memref<1x8x32xf32, #tpu.memory_space<vmem>>, vector<1x8x32xf32>
      %161 = vector.shape_cast %160 : vector<1x8x32xf32> to vector<8x32xf32>
      %c0_74 = arith.constant 0 : index
      %c0_75 = arith.constant 0 : index
      %162 = vector.load %arg4[%c0_74, %c0_75] : memref<1x32xf32, #tpu.memory_space<vmem>>, vector<1x32xf32>
      %c0_76 = arith.constant 0 : index
      %c0_77 = arith.constant 0 : index
      %163 = vector.load %arg5[%c0_76, %c0_77] : memref<1x32xf32, #tpu.memory_space<vmem>>, vector<1x32xf32>
      %cst_78 = arith.constant dense<0.000000e+00> : vector<8xf32>
      %164 = vector.multi_reduction <add>, %161, %cst_78 [1] : vector<8x32xf32> to vector<8xf32>
      %165 = vector.shape_cast %164 : vector<8xf32> to vector<8x1xf32>
      %cst_79 = arith.constant 3.200000e+01 : f32
      %166 = vector.broadcast %cst_79 : f32 to vector<8x1xf32>
      %167 = arith.divf %165, %166 : vector<8x1xf32>
      %168 = vector.broadcast %167 : vector<8x1xf32> to vector<8x32xf32>
      %169 = arith.subf %161, %168 : vector<8x32xf32>
      %170 = vector.broadcast %167 : vector<8x1xf32> to vector<8x32xf32>
      %171 = arith.subf %161, %170 : vector<8x32xf32>
      %172 = arith.mulf %169, %171 : vector<8x32xf32>
      %cst_80 = arith.constant dense<0.000000e+00> : vector<8xf32>
      %173 = vector.multi_reduction <add>, %172, %cst_80 [1] : vector<8x32xf32> to vector<8xf32>
      %174 = vector.shape_cast %173 : vector<8xf32> to vector<8x1xf32>
      %cst_81 = arith.constant 3.200000e+01 : f32
      %175 = vector.broadcast %cst_81 : f32 to vector<8x1xf32>
      %176 = arith.divf %174, %175 : vector<8x1xf32>
      %177 = vector.broadcast %167 : vector<8x1xf32> to vector<8x32xf32>
      %178 = arith.subf %161, %177 : vector<8x32xf32>
      %cst_82 = arith.constant 9.99999996E-13 : f32
      %179 = vector.broadcast %cst_82 : f32 to vector<8x1xf32>
      %180 = arith.addf %176, %179 : vector<8x1xf32>
      %181 = math.rsqrt %180 : vector<8x1xf32>
      %182 = vector.broadcast %181 : vector<8x1xf32> to vector<8x32xf32>
      %183 = arith.mulf %178, %182 : vector<8x32xf32>
      %184 = vector.broadcast %162 : vector<1x32xf32> to vector<8x32xf32>
      %185 = arith.mulf %183, %184 : vector<8x32xf32>
      %186 = vector.broadcast %163 : vector<1x32xf32> to vector<8x32xf32>
      %187 = arith.addf %185, %186 : vector<8x32xf32>
      %c0_83 = arith.constant 0 : index
      %c0_84 = arith.constant 0 : index
      %188 = vector.load %arg19[%c0_83, %c0_84] : memref<8x32xf32, #tpu.memory_space<vmem>>, vector<8x32xf32>
      tpu.vector_store %arg19[%c0_83, %c0_84], %187 {strides = array<i32>} : memref<8x32xf32, #tpu.memory_space<vmem>>, vector<8x32xf32>,
    } else {
    }
    %c0 = arith.constant 0 : index
    %c0_1 = arith.constant 0 : index
    %3 = vector.load %arg19[%c0, %c0_1] : memref<8x32xf32, #tpu.memory_space<vmem>>, vector<8x32xf32>
    %4 = arith.truncf %3 : vector<8x32xf32> to vector<8x32xbf16>
    %c0_2 = arith.constant 0 : index
    %c0_3 = arith.constant 0 : index
    %c0_4 = arith.constant 0 : index
    %5 = vector.load %arg6[%c0_2, %c0_3, %c0_4] : memref<1x32x96xbf16, #tpu.memory_space<vmem>>, vector<1x32x96xbf16>
    %6 = vector.shape_cast %5 : vector<1x32x96xbf16> to vector<32x96xbf16>
    %cst = arith.constant dense<0.000000e+00> : vector<8x96xf32>
    %7 = tpu.matmul %4, %6, %cst {dimension_numbers = #tpu.dot_dimension_numbers<[1], [0], [0], [1], [0, 0, 1, 1], [], []>} : vector<8x32xbf16>, vector<32x96xbf16>, vector<8x96xf32> -> vector<8x96xf32>
    %c0_5 = arith.constant 0 : index
    %c0_6 = arith.constant 0 : index
    %c0_7 = arith.constant 0 : index
    %8 = vector.load %arg7[%c0_5, %c0_6, %c0_7] : memref<1x1x96xf32, #tpu.memory_space<vmem>>, vector<1x1x96xf32>
    %9 = vector.shape_cast %8 : vector<1x1x96xf32> to vector<1x96xf32>
    %10 = vector.broadcast %9 : vector<1x96xf32> to vector<8x96xf32>
    %11 = arith.addf %7, %10 : vector<8x96xf32>
    %c0_8 = arith.constant 0 : index
    %c0_9 = arith.constant 0 : index
    %c0_10 = arith.constant 0 : index
    %12 = vector.load %arg3[%c0_8, %c0_9, %c0_10] : memref<1x1x8xf32, #tpu.memory_space<vmem>>, vector<1x1x8xf32>
    %13 = vector.shape_cast %12 : vector<1x1x8xf32> to vector<1x8xf32>
    %14 = vector.shape_cast %13 : vector<1x8xf32> to vector<1x8xf32>
    %15 = vector.broadcast %14 : vector<1x8xf32> to vector<8x8xf32>
    %16 = vector.extract_strided_slice %11 {offsets = [0, 0], sizes = [8, 16], strides = [1, 1]} : vector<8x96xf32> to vector<8x16xf32>
    %cst_11 = arith.constant 2.500000e-01 : f32
    %17 = vector.broadcast %cst_11 : f32 to vector<8x16xf32>
    %18 = arith.mulf %16, %17 : vector<8x16xf32>
    %19 = arith.truncf %18 : vector<8x16xf32> to vector<8x16xbf16>
    %20 = vector.extract_strided_slice %11 {offsets = [0, 32], sizes = [8, 16], strides = [1, 1]} : vector<8x96xf32> to vector<8x16xf32>
    %21 = arith.truncf %20 : vector<8x16xf32> to vector<8x16xbf16>
    %22 = vector.extract_strided_slice %11 {offsets = [0, 64], sizes = [8, 16], strides = [1, 1]} : vector<8x96xf32> to vector<8x16xf32>
    %23 = arith.truncf %22 : vector<8x16xf32> to vector<8x16xbf16>
    %cst_12 = arith.constant dense<0.000000e+00> : vector<8x8xf32>
    %24 = tpu.matmul %19, %21, %cst_12 {dimension_numbers = #tpu.dot_dimension_numbers<[1], [1], [0], [0], [0, 0, 1, 0], [], []>} : vector<8x16xbf16>, vector<8x16xbf16>, vector<8x8xf32> -> vector<8x8xf32>
    %25 = arith.addf %24, %15 : vector<8x8xf32>
    %cst_13 = arith.constant dense<0xFF800000> : vector<8xf32>
    %26 = vector.multi_reduction <maximumf>, %25, %cst_13 [1] : vector<8x8xf32> to vector<8xf32>
    %27 = vector.shape_cast %26 : vector<8xf32> to vector<8x1xf32>
    %28 = vector.broadcast %27 : vector<8x1xf32> to vector<8x8xf32>
    %29 = arith.subf %25, %28 : vector<8x8xf32>
    %30 = math.exp %29 : vector<8x8xf32>
    %cst_14 = arith.constant dense<0.000000e+00> : vector<8xf32>
    %31 = vector.multi_reduction <add>, %30, %cst_14 [1] : vector<8x8xf32> to vector<8xf32>
    %32 = vector.shape_cast %31 : vector<8xf32> to vector<8x1xf32>
    %33 = tpu.reciprocal %32 {approx = true} : vector<8x1xf32> -> vector<8x1xf32>
    %34 = vector.broadcast %33 : vector<8x1xf32> to vector<8x8xf32>
    %35 = arith.mulf %30, %34 : vector<8x8xf32>
    %36 = arith.truncf %35 : vector<8x8xf32> to vector<8x8xbf16>
    %cst_15 = arith.constant dense<0.000000e+00> : vector<8x16xf32>
    %37 = tpu.matmul %36, %23, %cst_15 {dimension_numbers = #tpu.dot_dimension_numbers<[1], [0], [0], [1], [0, 0, 1, 1], [], []>} : vector<8x8xbf16>, vector<8x16xbf16>, vector<8x16xf32> -> vector<8x16xf32>
    %38 = vector.extract_strided_slice %11 {offsets = [0, 16], sizes = [8, 16], strides = [1, 1]} : vector<8x96xf32> to vector<8x16xf32>
    %cst_16 = arith.constant 2.500000e-01 : f32
    %39 = vector.broadcast %cst_16 : f32 to vector<8x16xf32>
    %40 = arith.mulf %38, %39 : vector<8x16xf32>
    %41 = arith.truncf %40 : vector<8x16xf32> to vector<8x16xbf16>
    %42 = vector.extract_strided_slice %11 {offsets = [0, 48], sizes = [8, 16], strides = [1, 1]} : vector<8x96xf32> to vector<8x16xf32>
    %43 = arith.truncf %42 : vector<8x16xf32> to vector<8x16xbf16>
    %44 = vector.extract_strided_slice %11 {offsets = [0, 80], sizes = [8, 16], strides = [1, 1]} : vector<8x96xf32> to vector<8x16xf32>
    %45 = arith.truncf %44 : vector<8x16xf32> to vector<8x16xbf16>
    %cst_17 = arith.constant dense<0.000000e+00> : vector<8x8xf32>
    %46 = tpu.matmul %41, %43, %cst_17 {dimension_numbers = #tpu.dot_dimension_numbers<[1], [1], [0], [0], [0, 0, 1, 0], [], []>} : vector<8x16xbf16>, vector<8x16xbf16>, vector<8x8xf32> -> vector<8x8xf32>
    %47 = arith.addf %46, %15 : vector<8x8xf32>
    %cst_18 = arith.constant dense<0xFF800000> : vector<8xf32>
    %48 = vector.multi_reduction <maximumf>, %47, %cst_18 [1] : vector<8x8xf32> to vector<8xf32>
    %49 = vector.shape_cast %48 : vector<8xf32> to vector<8x1xf32>
    %50 = vector.broadcast %49 : vector<8x1xf32> to vector<8x8xf32>
    %51 = arith.subf %47, %50 : vector<8x8xf32>
    %52 = math.exp %51 : vector<8x8xf32>
    %cst_19 = arith.constant dense<0.000000e+00> : vector<8xf32>
    %53 = vector.multi_reduction <add>, %52, %cst_19 [1] : vector<8x8xf32> to vector<8xf32>
    %54 = vector.shape_cast %53 : vector<8xf32> to vector<8x1xf32>
    %55 = tpu.reciprocal %54 {approx = true} : vector<8x1xf32> -> vector<8x1xf32>
    %56 = vector.broadcast %55 : vector<8x1xf32> to vector<8x8xf32>
    %57 = arith.mulf %52, %56 : vector<8x8xf32>
    %58 = arith.truncf %57 : vector<8x8xf32> to vector<8x8xbf16>
    %cst_20 = arith.constant dense<0.000000e+00> : vector<8x16xf32>
    %59 = tpu.matmul %58, %45, %cst_20 {dimension_numbers = #tpu.dot_dimension_numbers<[1], [0], [0], [1], [0, 0, 1, 1], [], []>} : vector<8x8xbf16>, vector<8x16xbf16>, vector<8x16xf32> -> vector<8x16xf32>
    %60 = tpu.concatenate %37, %59 in 1 : vector<8x16xf32>, vector<8x16xf32> -> vector<8x32xf32>
    %61 = arith.truncf %60 : vector<8x32xf32> to vector<8x32xbf16>
    %c0_21 = arith.constant 0 : index
    %c0_22 = arith.constant 0 : index
    %c0_23 = arith.constant 0 : index
    %62 = vector.load %arg8[%c0_21, %c0_22, %c0_23] : memref<1x32x32xbf16, #tpu.memory_space<vmem>>, vector<1x32x32xbf16>
    %63 = vector.shape_cast %62 : vector<1x32x32xbf16> to vector<32x32xbf16>
    %cst_24 = arith.constant dense<0.000000e+00> : vector<8x32xf32>
    %64 = tpu.matmul %61, %63, %cst_24 {dimension_numbers = #tpu.dot_dimension_numbers<[1], [0], [0], [1], [0, 0, 1, 1], [], []>} : vector<8x32xbf16>, vector<32x32xbf16>, vector<8x32xf32> -> vector<8x32xf32>
    %c0_25 = arith.constant 0 : index
    %c0_26 = arith.constant 0 : index
    %c0_27 = arith.constant 0 : index
    %65 = vector.load %arg9[%c0_25, %c0_26, %c0_27] : memref<1x1x32xf32, #tpu.memory_space<vmem>>, vector<1x1x32xf32>
    %66 = vector.shape_cast %65 : vector<1x1x32xf32> to vector<1x32xf32>
    %67 = vector.broadcast %66 : vector<1x32xf32> to vector<8x32xf32>
    %68 = arith.addf %64, %67 : vector<8x32xf32>
    %69 = arith.addf %68, %3 : vector<8x32xf32>
    %c0_28 = arith.constant 0 : index
    %c0_29 = arith.constant 0 : index
    %c0_30 = arith.constant 0 : index
    %70 = vector.load %arg10[%c0_28, %c0_29, %c0_30] : memref<1x1x32xf32, #tpu.memory_space<vmem>>, vector<1x1x32xf32>
    %71 = vector.shape_cast %70 : vector<1x1x32xf32> to vector<1x32xf32>
    %c0_31 = arith.constant 0 : index
    %c0_32 = arith.constant 0 : index
    %c0_33 = arith.constant 0 : index
    %72 = vector.load %arg11[%c0_31, %c0_32, %c0_33] : memref<1x1x32xf32, #tpu.memory_space<vmem>>, vector<1x1x32xf32>
    %73 = vector.shape_cast %72 : vector<1x1x32xf32> to vector<1x32xf32>
    %cst_34 = arith.constant dense<0.000000e+00> : vector<8xf32>
    %74 = vector.multi_reduction <add>, %69, %cst_34 [1] : vector<8x32xf32> to vector<8xf32>
    %75 = vector.shape_cast %74 : vector<8xf32> to vector<8x1xf32>
    %cst_35 = arith.constant 3.200000e+01 : f32
    %76 = vector.broadcast %cst_35 : f32 to vector<8x1xf32>
    %77 = arith.divf %75, %76 : vector<8x1xf32>
    %78 = vector.broadcast %77 : vector<8x1xf32> to vector<8x32xf32>
    %79 = arith.subf %69, %78 : vector<8x32xf32>
    %80 = vector.broadcast %77 : vector<8x1xf32> to vector<8x32xf32>
    %81 = arith.subf %69, %80 : vector<8x32xf32>
    %82 = arith.mulf %79, %81 : vector<8x32xf32>
    %cst_36 = arith.constant dense<0.000000e+00> : vector<8xf32>
    %83 = vector.multi_reduction <add>, %82, %cst_36 [1] : vector<8x32xf32> to vector<8xf32>
    %84 = vector.shape_cast %83 : vector<8xf32> to vector<8x1xf32>
    %cst_37 = arith.constant 3.200000e+01 : f32
    %85 = vector.broadcast %cst_37 : f32 to vector<8x1xf32>
    %86 = arith.divf %84, %85 : vector<8x1xf32>
    %87 = vector.broadcast %77 : vector<8x1xf32> to vector<8x32xf32>
    %88 = arith.subf %69, %87 : vector<8x32xf32>
    %cst_38 = arith.constant 9.99999996E-13 : f32
    %89 = vector.broadcast %cst_38 : f32 to vector<8x1xf32>
    %90 = arith.addf %86, %89 : vector<8x1xf32>
    %91 = math.rsqrt %90 : vector<8x1xf32>
    %92 = vector.broadcast %91 : vector<8x1xf32> to vector<8x32xf32>
    %93 = arith.mulf %88, %92 : vector<8x32xf32>
    %94 = vector.broadcast %71 : vector<1x32xf32> to vector<8x32xf32>
    %95 = arith.mulf %93, %94 : vector<8x32xf32>
    %96 = vector.broadcast %73 : vector<1x32xf32> to vector<8x32xf32>
    %97 = arith.addf %95, %96 : vector<8x32xf32>
    %98 = arith.truncf %97 : vector<8x32xf32> to vector<8x32xbf16>
    %c0_39 = arith.constant 0 : index
    %c0_40 = arith.constant 0 : index
    %c0_41 = arith.constant 0 : index
    %99 = vector.load %arg12[%c0_39, %c0_40, %c0_41] : memref<1x32x64xbf16, #tpu.memory_space<vmem>>, vector<1x32x64xbf16>
    %100 = vector.shape_cast %99 : vector<1x32x64xbf16> to vector<32x64xbf16>
    %cst_42 = arith.constant dense<0.000000e+00> : vector<8x64xf32>
    %101 = tpu.matmul %98, %100, %cst_42 {dimension_numbers = #tpu.dot_dimension_numbers<[1], [0], [0], [1], [0, 0, 1, 1], [], []>} : vector<8x32xbf16>, vector<32x64xbf16>, vector<8x64xf32> -> vector<8x64xf32>
    %c0_43 = arith.constant 0 : index
    %c0_44 = arith.constant 0 : index
    %c0_45 = arith.constant 0 : index
    %102 = vector.load %arg13[%c0_43, %c0_44, %c0_45] : memref<1x1x64xf32, #tpu.memory_space<vmem>>, vector<1x1x64xf32>
    %103 = vector.shape_cast %102 : vector<1x1x64xf32> to vector<1x64xf32>
    %104 = vector.broadcast %103 : vector<1x64xf32> to vector<8x64xf32>
    %105 = arith.addf %101, %104 : vector<8x64xf32>
    %cst_46 = arith.constant 5.000000e-01 : f32
    %106 = vector.broadcast %cst_46 : f32 to vector<8x64xf32>
    %107 = arith.mulf %106, %105 : vector<8x64xf32>
    %cst_47 = arith.constant 4.471500e-02 : f32
    %108 = vector.broadcast %cst_47 : f32 to vector<8x64xf32>
    %109 = arith.mulf %108, %105 : vector<8x64xf32>
    %110 = arith.mulf %109, %105 : vector<8x64xf32>
    %111 = arith.mulf %110, %105 : vector<8x64xf32>
    %112 = arith.addf %105, %111 : vector<8x64xf32>
    %cst_48 = arith.constant 0.797884583 : f32
    %113 = vector.broadcast %cst_48 : f32 to vector<8x64xf32>
    %114 = arith.mulf %113, %112 : vector<8x64xf32>
    %115 = math.tanh %114 : vector<8x64xf32>
    %cst_49 = arith.constant 1.000000e+00 : f32
    %116 = vector.broadcast %cst_49 : f32 to vector<8x64xf32>
    %117 = arith.addf %116, %115 : vector<8x64xf32>
    %118 = arith.mulf %107, %117 : vector<8x64xf32>
    %119 = arith.truncf %118 : vector<8x64xf32> to vector<8x64xbf16>
    %c0_50 = arith.constant 0 : index
    %c0_51 = arith.constant 0 : index
    %c0_52 = arith.constant 0 : index
    %120 = vector.load %arg14[%c0_50, %c0_51, %c0_52] : memref<1x64x32xbf16, #tpu.memory_space<vmem>>, vector<1x64x32xbf16>
    %121 = vector.shape_cast %120 : vector<1x64x32xbf16> to vector<64x32xbf16>
    %cst_53 = arith.constant dense<0.000000e+00> : vector<8x32xf32>
    %122 = tpu.matmul %119, %121, %cst_53 {dimension_numbers = #tpu.dot_dimension_numbers<[1], [0], [0], [1], [0, 0, 1, 1], [], []>} : vector<8x64xbf16>, vector<64x32xbf16>, vector<8x32xf32> -> vector<8x32xf32>
    %c0_54 = arith.constant 0 : index
    %c0_55 = arith.constant 0 : index
    %c0_56 = arith.constant 0 : index
    %123 = vector.load %arg15[%c0_54, %c0_55, %c0_56] : memref<1x1x32xf32, #tpu.memory_space<vmem>>, vector<1x1x32xf32>
    %124 = vector.shape_cast %123 : vector<1x1x32xf32> to vector<1x32xf32>
    %125 = vector.broadcast %124 : vector<1x32xf32> to vector<8x32xf32>
    %126 = arith.addf %122, %125 : vector<8x32xf32>
    %127 = arith.addf %126, %97 : vector<8x32xf32>
    %c0_57 = arith.constant 0 : index
    %c0_58 = arith.constant 0 : index
    %c0_59 = arith.constant 0 : index
    %128 = vector.load %arg16[%c0_57, %c0_58, %c0_59] : memref<1x1x32xf32, #tpu.memory_space<vmem>>, vector<1x1x32xf32>
    %129 = vector.shape_cast %128 : vector<1x1x32xf32> to vector<1x32xf32>
    %c0_60 = arith.constant 0 : index
    %c0_61 = arith.constant 0 : index
    %c0_62 = arith.constant 0 : index
    %130 = vector.load %arg17[%c0_60, %c0_61, %c0_62] : memref<1x1x32xf32, #tpu.memory_space<vmem>>, vector<1x1x32xf32>
    %131 = vector.shape_cast %130 : vector<1x1x32xf32> to vector<1x32xf32>
    %cst_63 = arith.constant dense<0.000000e+00> : vector<8xf32>
    %132 = vector.multi_reduction <add>, %127, %cst_63 [1] : vector<8x32xf32> to vector<8xf32>
    %133 = vector.shape_cast %132 : vector<8xf32> to vector<8x1xf32>
    %cst_64 = arith.constant 3.200000e+01 : f32
    %134 = vector.broadcast %cst_64 : f32 to vector<8x1xf32>
    %135 = arith.divf %133, %134 : vector<8x1xf32>
    %136 = vector.broadcast %135 : vector<8x1xf32> to vector<8x32xf32>
    %137 = arith.subf %127, %136 : vector<8x32xf32>
    %138 = vector.broadcast %135 : vector<8x1xf32> to vector<8x32xf32>
    %139 = arith.subf %127, %138 : vector<8x32xf32>
    %140 = arith.mulf %137, %139 : vector<8x32xf32>
    %cst_65 = arith.constant dense<0.000000e+00> : vector<8xf32>
    %141 = vector.multi_reduction <add>, %140, %cst_65 [1] : vector<8x32xf32> to vector<8xf32>
    %142 = vector.shape_cast %141 : vector<8xf32> to vector<8x1xf32>
    %cst_66 = arith.constant 3.200000e+01 : f32
    %143 = vector.broadcast %cst_66 : f32 to vector<8x1xf32>
    %144 = arith.divf %142, %143 : vector<8x1xf32>
    %145 = vector.broadcast %135 : vector<8x1xf32> to vector<8x32xf32>
    %146 = arith.subf %127, %145 : vector<8x32xf32>
    %cst_67 = arith.constant 9.99999996E-13 : f32
    %147 = vector.broadcast %cst_67 : f32 to vector<8x1xf32>
    %148 = arith.addf %144, %147 : vector<8x1xf32>
    %149 = math.rsqrt %148 : vector<8x1xf32>
    %150 = vector.broadcast %149 : vector<8x1xf32> to vector<8x32xf32>
    %151 = arith.mulf %146, %150 : vector<8x32xf32>
    %152 = vector.broadcast %129 : vector<1x32xf32> to vector<8x32xf32>
    %153 = arith.mulf %151, %152 : vector<8x32xf32>
    %154 = vector.broadcast %131 : vector<1x32xf32> to vector<8x32xf32>
    %155 = arith.addf %153, %154 : vector<8x32xf32>
    %c0_68 = arith.constant 0 : index
    %c0_69 = arith.constant 0 : index
    %156 = vector.load %arg19[%c0_68, %c0_69] : memref<8x32xf32, #tpu.memory_space<vmem>>, vector<8x32xf32>
    tpu.vector_store %arg19[%c0_68, %c0_69], %155 {strides = array<i32>} : memref<8x32xf32, #tpu.memory_space<vmem>>, vector<8x32xf32>,
    %c1_i32 = arith.constant 1 : i32
    %157 = arith.cmpi eq, %arg1, %c1_i32 : i32
    %158 = arith.extui %157 : i1 to i32
    %c0_i32_70 = arith.constant 0 : i32
    %159 = arith.cmpi ne, %158, %c0_i32_70 : i32
    scf.if %159 {
      %c0_71 = arith.constant 0 : index
      %c0_72 = arith.constant 0 : index
      %c0_73 = arith.constant 0 : index
      %160 = vector.load %arg18[%c0_71, %c0_72, %c0_73] : memref<1x8x32xf32, #tpu.memory_space<vmem>>, vector<1x8x32xf32>
      %161 = vector.shape_cast %160 : vector<1x8x32xf32> to vector<8x32xf32>
      %162 = vector.shape_cast %155 : vector<8x32xf32> to vector<1x8x32xf32>
      tpu.vector_store %arg18[%c0_71, %c0_72, %c0_73], %162 {strides = array<i32>} : memref<1x8x32xf32, #tpu.memory_space<vmem>>, vector<1x8x32xf32>,
    } else {
    }
    return
  }
  func.func @transform_0(%arg0: i32, %arg1: i32) -> (i32, i32, i32) {
    %c0_i32 = arith.constant 0 : i32
    %c0_i32_0 = arith.constant 0 : i32
    %c0_i32_1 = arith.constant 0 : i32
    return %arg0, %c0_i32, %c0_i32_0 : i32, i32, i32
  }
  func.func @transform_1(%arg0: i32, %arg1: i32) -> (i32, i32, i32) {
    %c0_i32 = arith.constant 0 : i32
    %c0_i32_0 = arith.constant 0 : i32
    %c0_i32_1 = arith.constant 0 : i32
    return %arg0, %c0_i32, %c0_i32_0 : i32, i32, i32
  }
  func.func @transform_2(%arg0: i32, %arg1: i32) -> (i32, i32) {
    %c0_i32 = arith.constant 0 : i32
    %c0_i32_0 = arith.constant 0 : i32
    %c0_i32_1 = arith.constant 0 : i32
    return %c0_i32, %c0_i32_0 : i32, i32
  }
  func.func @transform_3(%arg0: i32, %arg1: i32) -> (i32, i32) {
    %c0_i32 = arith.constant 0 : i32
    %c0_i32_0 = arith.constant 0 : i32
    %c0_i32_1 = arith.constant 0 : i32
    return %c0_i32, %c0_i32_0 : i32, i32
  }
  func.func @transform_4(%arg0: i32, %arg1: i32) -> (i32, i32, i32) {
    %c0_i32 = arith.constant 0 : i32
    %c0_i32_0 = arith.constant 0 : i32
    %c0_i32_1 = arith.constant 0 : i32
    return %arg1, %c0_i32, %c0_i32_0 : i32, i32, i32
  }
  func.func @transform_5(%arg0: i32, %arg1: i32) -> (i32, i32, i32) {
    %c0_i32 = arith.constant 0 : i32
    %c0_i32_0 = arith.constant 0 : i32
    %c0_i32_1 = arith.constant 0 : i32
    return %arg1, %c0_i32, %c0_i32_0 : i32, i32, i32
  }
  func.func @transform_6(%arg0: i32, %arg1: i32) -> (i32, i32, i32) {
    %c0_i32 = arith.constant 0 : i32
    %c0_i32_0 = arith.constant 0 : i32
    %c0_i32_1 = arith.constant 0 : i32
    return %arg1, %c0_i32, %c0_i32_0 : i32, i32, i32
  }
  func.func @transform_7(%arg0: i32, %arg1: i32) -> (i32, i32, i32) {
    %c0_i32 = arith.constant 0 : i32
    %c0_i32_0 = arith.constant 0 : i32
    %c0_i32_1 = arith.constant 0 : i32
    return %arg1, %c0_i32, %c0_i32_0 : i32, i32, i32
  }
  func.func @transform_8(%arg0: i32, %arg1: i32) -> (i32, i32, i32) {
    %c0_i32 = arith.constant 0 : i32
    %c0_i32_0 = arith.constant 0 : i32
    %c0_i32_1 = arith.constant 0 : i32
    return %arg1, %c0_i32, %c0_i32_0 : i32, i32, i32
  }
  func.func @transform_9(%arg0: i32, %arg1: i32) -> (i32, i32, i32) {
    %c0_i32 = arith.constant 0 : i32
    %c0_i32_0 = arith.constant 0 : i32
    %c0_i32_1 = arith.constant 0 : i32
    return %arg1, %c0_i32, %c0_i32_0 : i32, i32, i32
  }
  func.func @transform_10(%arg0: i32, %arg1: i32) -> (i32, i32, i32) {
    %c0_i32 = arith.constant 0 : i32
    %c0_i32_0 = arith.constant 0 : i32
    %c0_i32_1 = arith.constant 0 : i32
    return %arg1, %c0_i32, %c0_i32_0 : i32, i32, i32
  }
  func.func @transform_11(%arg0: i32, %arg1: i32) -> (i32, i32, i32) {
    %c0_i32 = arith.constant 0 : i32
    %c0_i32_0 = arith.constant 0 : i32
    %c0_i32_1 = arith.constant 0 : i32
    return %arg1, %c0_i32, %c0_i32_0 : i32, i32, i32
  }
  func.func @transform_12(%arg0: i32, %arg1: i32) -> (i32, i32, i32) {
    %c0_i32 = arith.constant 0 : i32
    %c0_i32_0 = arith.constant 0 : i32
    %c0_i32_1 = arith.constant 0 : i32
    return %arg1, %c0_i32, %c0_i32_0 : i32, i32, i32
  }
  func.func @transform_13(%arg0: i32, %arg1: i32) -> (i32, i32, i32) {
    %c0_i32 = arith.constant 0 : i32
    %c0_i32_0 = arith.constant 0 : i32
    %c0_i32_1 = arith.constant 0 : i32
    return %arg1, %c0_i32, %c0_i32_0 : i32, i32, i32
  }
  func.func @transform_14(%arg0: i32, %arg1: i32) -> (i32, i32, i32) {
    %c0_i32 = arith.constant 0 : i32
    %c0_i32_0 = arith.constant 0 : i32
    %c0_i32_1 = arith.constant 0 : i32
    return %arg1, %c0_i32, %c0_i32_0 : i32, i32, i32
  }
  func.func @transform_15(%arg0: i32, %arg1: i32) -> (i32, i32, i32) {
    %c0_i32 = arith.constant 0 : i32
    %c0_i32_0 = arith.constant 0 : i32
    %c0_i32_1 = arith.constant 0 : i32
    return %arg1, %c0_i32, %c0_i32_0 : i32, i32, i32
  }
  func.func @transform_16(%arg0: i32, %arg1: i32) -> (i32, i32, i32) {
    %c0_i32 = arith.constant 0 : i32
    %c0_i32_0 = arith.constant 0 : i32
    %c0_i32_1 = arith.constant 0 : i32
    return %arg0, %c0_i32, %c0_i32_0 : i32, i32, i32
  }
}

</mosaic_0001>

<llo_original>
// kernel: _lambda_.1
$region0: #{_lambda_.1}
  #allocation0 [shape = 'u32[]', space=smem, size = 0x4, offset = 0x4, fixed_abs, tag = 'smem constant byte address 0x4 - core index']
  #allocation1 [shape = 'u32[144,128]{1,0:T(1,128)}', space=vmem, size = 0x12000, scoped, tag = 'internal scratch']
  #allocation2 [shape = 'f32[8,32]{1,0:T(8,128)}', space=vmem, size = 0x1000, scoped, tag = 'scratch operand']
  %s0 = inlined_call_operand.vmem [shape: f32[2,8,32], index: 0, kind: input, shape index: {}]
  %s1 = inlined_call_operand.vmem [shape: f32[2,1,8], index: 1, kind: input, shape index: {}]
  %s2 = inlined_call_operand.vmem [shape: f32[1,32], index: 2, kind: input, shape index: {}]
  %s3 = inlined_call_operand.vmem [shape: f32[1,32], index: 3, kind: input, shape index: {}]
  %s4 = inlined_call_operand.vmem [shape: bf16[2,32,96], index: 4, kind: input, shape index: {}]
  %s5 = inlined_call_operand.vmem [shape: f32[2,1,96], index: 5, kind: input, shape index: {}]
  %s6 = inlined_call_operand.vmem [shape: bf16[2,32,32], index: 6, kind: input, shape index: {}]
  %s7 = inlined_call_operand.vmem [shape: f32[2,1,32], index: 7, kind: input, shape index: {}]
  %s8 = inlined_call_operand.vmem [shape: f32[2,1,32], index: 8, kind: input, shape index: {}]
  %s9 = inlined_call_operand.vmem [shape: f32[2,1,32], index: 9, kind: input, shape index: {}]
  %s10 = inlined_call_operand.vmem [shape: bf16[2,32,64], index: 10, kind: input, shape index: {}]
  %s11 = inlined_call_operand.vmem [shape: f32[2,1,64], index: 11, kind: input, shape index: {}]
  %s12 = inlined_call_operand.vmem [shape: bf16[2,64,32], index: 12, kind: input, shape index: {}]
  %s13 = inlined_call_operand.vmem [shape: f32[2,1,32], index: 13, kind: input, shape index: {}]
  %s14 = inlined_call_operand.vmem [shape: f32[2,1,32], index: 14, kind: input, shape index: {}]
  %s15 = inlined_call_operand.vmem [shape: f32[2,1,32], index: 15, kind: input, shape index: {}]
  %s16 = inlined_call_operand.hbm [shape: f32[2,8,32], index: 16, kind: output, shape index: {}]
  %s17 = sld [smem:[#allocation0]]
  $region105: #{_lambda_.1} parent=0
    _
  %s19 = ssub.s32 1, %s17
  %s20 = scalar_select 0, %s19, %s17
  $region1: #{_lambda_.1} parent=0
    #allocation3 [shape = 'u8[8192]{0}', space=vmem, size = 0x2000, scoped, tag = 'output window, operand 0']
    #allocation4 [shape = 's32[2]{0}', space=sflag, size = 0x8, scoped, tag = 'scoped memory for _lambda_.1']
    %21 = vsyncpa [#allocation4], 0
    %s22 = scalar_lea.sflag [#allocation4], 1
    %23 = vsyncpa %s22, 0
    loop: start=0, step=1, limit=6
    $region2: #{_lambda_.1} parent=1 // loop_pre_header
      _
    $region3: #{_lambda_.1} parent=1 // loop_header
      %s25 = sphi 0, %s29
      %p26 = scmp.ge.s32.totalorder %s25, 6
      %s32 = sphi 0, %s44
      %s33 = sphi 0, %s40
      %s34 = sphi 0, %s32
      %s35 = sphi 0, %s33
      %s36 = sphi 0, %s34
      %s37 = sphi 0, %s35
      %s47 = sphi 0, %s49
      %s50 = sphi 0, %s47
      %s51 = sphi 0, %s50
      %s67 = sphi 0, %s51
      %s73 = sphi 0, %s75
      %s76 = sphi 0, %s73
      %s77 = sphi 0, %s76
      %s93 = sphi 0, %s77
      %s97 = sphi 0, %s97
      %s99 = sphi 0, %s97
      %s100 = sphi 0, %s99
      %s114 = sphi 0, %s100
      %s118 = sphi 0, %s118
      %s120 = sphi 0, %s118
      %s121 = sphi 0, %s120
      %s135 = sphi 0, %s121
      %s141 = sphi 0, %s143
      %s144 = sphi 0, %s141
      %s145 = sphi 0, %s144
      %s161 = sphi 0, %s145
      %s167 = sphi 0, %s169
      %s170 = sphi 0, %s167
      %s171 = sphi 0, %s170
      %s187 = sphi 0, %s171
      %s193 = sphi 0, %s195
      %s196 = sphi 0, %s193
      %s197 = sphi 0, %s196
      %s213 = sphi 0, %s197
      %s219 = sphi 0, %s221
      %s222 = sphi 0, %s219
      %s223 = sphi 0, %s222
      %s239 = sphi 0, %s223
      %s245 = sphi 0, %s247
      %s248 = sphi 0, %s245
      %s249 = sphi 0, %s248
      %s265 = sphi 0, %s249
      %s271 = sphi 0, %s273
      %s274 = sphi 0, %s271
      %s275 = sphi 0, %s274
      %s291 = sphi 0, %s275
      %s297 = sphi 0, %s299
      %s300 = sphi 0, %s297
      %s301 = sphi 0, %s300
      %s317 = sphi 0, %s301
      %s323 = sphi 0, %s325
      %s326 = sphi 0, %s323
      %s327 = sphi 0, %s326
      %s343 = sphi 0, %s327
      %s349 = sphi 0, %s351
      %s352 = sphi 0, %s349
      %s353 = sphi 0, %s352
      %s369 = sphi 0, %s353
      %s375 = sphi 0, %s377
      %s378 = sphi 0, %s375
      %s379 = sphi 0, %s378
      %s395 = sphi 0, %s379
      %s401 = sphi 0, %s403
      %s404 = sphi 0, %s401
      %s405 = sphi 0, %s404
      %s421 = sphi 0, %s405
      %s427 = sphi 0, %s429
      %s430 = sphi 0, %s427
      %s431 = sphi 0, %s430
      %s447 = sphi 0, %s431
      %s453 = sphi 0, %s455
      %s456 = sphi 0, %s453
      %s457 = sphi 0, %s456
      %s473 = sphi 0, %s457
    $region4: #{_lambda_.1} parent=1 // loop_header_branch
      %28 = sbr.rel (%p26) target = $region8
    $region5: #{_lambda_.1} parent=1 // loop_body
      %s30 = ssub.s32 %s25, 1
      %s31 = ssub.s32 %s25, 2
      %s38 = sadd.s32 1, %s33
      %p39 = scmp.ge.s32.totalorder %s38, 2
      %s40 = scalar_select %p39, 0, %s38
      %s41 = sadd.s32 1, %s32
      %s42 = scalar_select %p39, %s41, %s32
      %p43 = scmp.ge.s32.totalorder %s42, 2
      %s44 = scalar_select %p43, 0, %s42
      %s45 = ssub.s32 %s32, %s44
      %p46 = scmp.eq.s32.totalorder %s45, 0
      %s48 = sadd.s32 %s47, 1
      %s49 = scalar_select %p46, %s47, %s48
      %p52 = pneg %p46
      %p53 = scmp.eq.s32.totalorder %s25, 3
      %p54 = por %p52, %p53
      %p55 = scmp.ne.s32.totalorder %s47, %s50
      %p56 = scmp.eq.s32.totalorder %s25, 0
      %p57 = por %p55, %p56
      %p58 = scmp.ne.s32.totalorder %s47, %s50
      %p59 = scmp.eq.s32.totalorder %s30, 3
      %p60 = por %p58, %p59
      %p61 = scmp.ne.s32.totalorder %s50, %s51
      %p62 = scmp.eq.s32.totalorder %s30, 0
      %p63 = por %p61, %p62
      %p64 = scmp.ne.s32.totalorder %s50, %s51
      %p65 = scmp.eq.s32.totalorder %s31, 3
      %p66 = por %p64, %p65
      %p68 = scmp.ne.s32.totalorder %s51, %s67
      %p69 = scmp.eq.s32.totalorder %s31, 0
      %p70 = por %p68, %p69
      %s71 = ssub.s32 %s32, %s44
      %p72 = scmp.eq.s32.totalorder %s71, 0
      %s74 = sadd.s32 %s73, 1
      %s75 = scalar_select %p72, %s73, %s74
      %p78 = pneg %p72
      %p79 = scmp.eq.s32.totalorder %s25, 3
      %p80 = por %p78, %p79
      %p81 = scmp.ne.s32.totalorder %s73, %s76
      %p82 = scmp.eq.s32.totalorder %s25, 0
      %p83 = por %p81, %p82
      %p84 = scmp.ne.s32.totalorder %s73, %s76
      %p85 = scmp.eq.s32.totalorder %s30, 3
      %p86 = por %p84, %p85
      %p87 = scmp.ne.s32.totalorder %s76, %s77
      %p88 = scmp.eq.s32.totalorder %s30, 0
      %p89 = por %p87, %p88
      %p90 = scmp.ne.s32.totalorder %s76, %s77
      %p91 = scmp.eq.s32.totalorder %s31, 3
      %p92 = por %p90, %p91
      %p94 = scmp.ne.s32.totalorder %s77, %s93
      %p95 = scmp.eq.s32.totalorder %s31, 0
      %p96 = por %p94, %p95
      %s98 = sadd.s32 %s97, 1
      %p101 = scmp.eq.s32.totalorder %s25, 3
      %p102 = scmp.ne.s32.totalorder %s97, %s99
      %p103 = scmp.eq.s32.totalorder %s25, 0
      %p104 = por %p102, %p103
      %p105 = scmp.ne.s32.totalorder %s97, %s99
      %p106 = scmp.eq.s32.totalorder %s30, 3
      %p107 = por %p105, %p106
      %p108 = scmp.ne.s32.totalorder %s99, %s100
      %p109 = scmp.eq.s32.totalorder %s30, 0
      %p110 = por %p108, %p109
      %p111 = scmp.ne.s32.totalorder %s99, %s100
      %p112 = scmp.eq.s32.totalorder %s31, 3
      %p113 = por %p111, %p112
      %p115 = scmp.ne.s32.totalorder %s100, %s114
      %p116 = scmp.eq.s32.totalorder %s31, 0
      %p117 = por %p115, %p116
      %s119 = sadd.s32 %s118, 1
      %p122 = scmp.eq.s32.totalorder %s25, 3
      %p123 = scmp.ne.s32.totalorder %s118, %s120
      %p124 = scmp.eq.s32.totalorder %s25, 0
      %p125 = por %p123, %p124
      %p126 = scmp.ne.s32.totalorder %s118, %s120
      %p127 = scmp.eq.s32.totalorder %s30, 3
      %p128 = por %p126, %p127
      %p129 = scmp.ne.s32.totalorder %s120, %s121
      %p130 = scmp.eq.s32.totalorder %s30, 0
      %p131 = por %p129, %p130
      %p132 = scmp.ne.s32.totalorder %s120, %s121
      %p133 = scmp.eq.s32.totalorder %s31, 3
      %p134 = por %p132, %p133
      %p136 = scmp.ne.s32.totalorder %s121, %s135
      %p137 = scmp.eq.s32.totalorder %s31, 0
      %p138 = por %p136, %p137
      %s139 = ssub.s32 %s33, %s40
      %p140 = scmp.eq.s32.totalorder %s139, 0
      %s142 = sadd.s32 %s141, 1
      %s143 = scalar_select %p140, %s141, %s142
      %p146 = pneg %p140
      %p147 = scmp.eq.s32.totalorder %s25, 3
      %p148 = por %p146, %p147
      %p149 = scmp.ne.s32.totalorder %s141, %s144
      %p150 = scmp.eq.s32.totalorder %s25, 0
      %p151 = por %p149, %p150
      %p152 = scmp.ne.s32.totalorder %s141, %s144
      %p153 = scmp.eq.s32.totalorder %s30, 3
      %p154 = por %p152, %p153
      %p155 = scmp.ne.s32.totalorder %s144, %s145
      %p156 = scmp.eq.s32.totalorder %s30, 0
      %p157 = por %p155, %p156
      %p158 = scmp.ne.s32.totalorder %s144, %s145
      %p159 = scmp.eq.s32.totalorder %s31, 3
      %p160 = por %p158, %p159
      %p162 = scmp.ne.s32.totalorder %s145, %s161
      %p163 = scmp.eq.s32.totalorder %s31, 0
      %p164 = por %p162, %p163
      %s165 = ssub.s32 %s33, %s40
      %p166 = scmp.eq.s32.totalorder %s165, 0
      %s168 = sadd.s32 %s167, 1
      %s169 = scalar_select %p166, %s167, %s168
      %p172 = pneg %p166
      %p173 = scmp.eq.s32.totalorder %s25, 3
      %p174 = por %p172, %p173
      %p175 = scmp.ne.s32.totalorder %s167, %s170
      %p176 = scmp.eq.s32.totalorder %s25, 0
      %p177 = por %p175, %p176
      %p178 = scmp.ne.s32.totalorder %s167, %s170
      %p179 = scmp.eq.s32.totalorder %s30, 3
      %p180 = por %p178, %p179
      %p181 = scmp.ne.s32.totalorder %s170, %s171
      %p182 = scmp.eq.s32.totalorder %s30, 0
      %p183 = por %p181, %p182
      %p184 = scmp.ne.s32.totalorder %s170, %s171
      %p185 = scmp.eq.s32.totalorder %s31, 3
      %p186 = por %p184, %p185
      %p188 = scmp.ne.s32.totalorder %s171, %s187
      %p189 = scmp.eq.s32.totalorder %s31, 0
      %p190 = por %p188, %p189
      %s191 = ssub.s32 %s33, %s40
      %p192 = scmp.eq.s32.totalorder %s191, 0
      %s194 = sadd.s32 %s193, 1
      %s195 = scalar_select %p192, %s193, %s194
      %p198 = pneg %p192
      %p199 = scmp.eq.s32.totalorder %s25, 3
      %p200 = por %p198, %p199
      %p201 = scmp.ne.s32.totalorder %s193, %s196
      %p202 = scmp.eq.s32.totalorder %s25, 0
      %p203 = por %p201, %p202
      %p204 = scmp.ne.s32.totalorder %s193, %s196
      %p205 = scmp.eq.s32.totalorder %s30, 3
      %p206 = por %p204, %p205
      %p207 = scmp.ne.s32.totalorder %s196, %s197
      %p208 = scmp.eq.s32.totalorder %s30, 0
      %p209 = por %p207, %p208
      %p210 = scmp.ne.s32.totalorder %s196, %s197
      %p211 = scmp.eq.s32.totalorder %s31, 3
      %p212 = por %p210, %p211
      %p214 = scmp.ne.s32.totalorder %s197, %s213
      %p215 = scmp.eq.s32.totalorder %s31, 0
      %p216 = por %p214, %p215
      %s217 = ssub.s32 %s33, %s40
      %p218 = scmp.eq.s32.totalorder %s217, 0
      %s220 = sadd.s32 %s219, 1
      %s221 = scalar_select %p218, %s219, %s220
      %p224 = pneg %p218
      %p225 = scmp.eq.s32.totalorder %s25, 3
      %p226 = por %p224, %p225
      %p227 = scmp.ne.s32.totalorder %s219, %s222
      %p228 = scmp.eq.s32.totalorder %s25, 0
      %p229 = por %p227, %p228
      %p230 = scmp.ne.s32.totalorder %s219, %s222
      %p231 = scmp.eq.s32.totalorder %s30, 3
      %p232 = por %p230, %p231
      %p233 = scmp.ne.s32.totalorder %s222, %s223
      %p234 = scmp.eq.s32.totalorder %s30, 0
      %p235 = por %p233, %p234
      %p236 = scmp.ne.s32.totalorder %s222, %s223
      %p237 = scmp.eq.s32.totalorder %s31, 3
      %p238 = por %p236, %p237
      %p240 = scmp.ne.s32.totalorder %s223, %s239
      %p241 = scmp.eq.s32.totalorder %s31, 0
      %p242 = por %p240, %p241
      %s243 = ssub.s32 %s33, %s40
      %p244 = scmp.eq.s32.totalorder %s243, 0
      %s246 = sadd.s32 %s245, 1
      %s247 = scalar_select %p244, %s245, %s246
      %p250 = pneg %p244
      %p251 = scmp.eq.s32.totalorder %s25, 3
      %p252 = por %p250, %p251
      %p253 = scmp.ne.s32.totalorder %s245, %s248
      %p254 = scmp.eq.s32.totalorder %s25, 0
      %p255 = por %p253, %p254
      %p256 = scmp.ne.s32.totalorder %s245, %s248
      %p257 = scmp.eq.s32.totalorder %s30, 3
      %p258 = por %p256, %p257
      %p259 = scmp.ne.s32.totalorder %s248, %s249
      %p260 = scmp.eq.s32.totalorder %s30, 0
      %p261 = por %p259, %p260
      %p262 = scmp.ne.s32.totalorder %s248, %s249
      %p263 = scmp.eq.s32.totalorder %s31, 3
      %p264 = por %p262, %p263
      %p266 = scmp.ne.s32.totalorder %s249, %s265
      %p267 = scmp.eq.s32.totalorder %s31, 0
      %p268 = por %p266, %p267
      %s269 = ssub.s32 %s33, %s40
      %p270 = scmp.eq.s32.totalorder %s269, 0
      %s272 = sadd.s32 %s271, 1
      %s273 = scalar_select %p270, %s271, %s272
      %p276 = pneg %p270
      %p277 = scmp.eq.s32.totalorder %s25, 3
      %p278 = por %p276, %p277
      %p279 = scmp.ne.s32.totalorder %s271, %s274
      %p280 = scmp.eq.s32.totalorder %s25, 0
      %p281 = por %p279, %p280
      %p282 = scmp.ne.s32.totalorder %s271, %s274
      %p283 = scmp.eq.s32.totalorder %s30, 3
      %p284 = por %p282, %p283
      %p285 = scmp.ne.s32.totalorder %s274, %s275
      %p286 = scmp.eq.s32.totalorder %s30, 0
      %p287 = por %p285, %p286
      %p288 = scmp.ne.s32.totalorder %s274, %s275
      %p289 = scmp.eq.s32.totalorder %s31, 3
      %p290 = por %p288, %p289
      %p292 = scmp.ne.s32.totalorder %s275, %s291
      %p293 = scmp.eq.s32.totalorder %s31, 0
      %p294 = por %p292, %p293
      %s295 = ssub.s32 %s33, %s40
      %p296 = scmp.eq.s32.totalorder %s295, 0
      %s298 = sadd.s32 %s297, 1
      %s299 = scalar_select %p296, %s297, %s298
      %p302 = pneg %p296
      %p303 = scmp.eq.s32.totalorder %s25, 3
      %p304 = por %p302, %p303
      %p305 = scmp.ne.s32.totalorder %s297, %s300
      %p306 = scmp.eq.s32.totalorder %s25, 0
      %p307 = por %p305, %p306
      %p308 = scmp.ne.s32.totalorder %s297, %s300
      %p309 = scmp.eq.s32.totalorder %s30, 3
      %p310 = por %p308, %p309
      %p311 = scmp.ne.s32.totalorder %s300, %s301
      %p312 = scmp.eq.s32.totalorder %s30, 0
      %p313 = por %p311, %p312
      %p314 = scmp.ne.s32.totalorder %s300, %s301
      %p315 = scmp.eq.s32.totalorder %s31, 3
      %p316 = por %p314, %p315
      %p318 = scmp.ne.s32.totalorder %s301, %s317
      %p319 = scmp.eq.s32.totalorder %s31, 0
      %p320 = por %p318, %p319
      %s321 = ssub.s32 %s33, %s40
      %p322 = scmp.eq.s32.totalorder %s321, 0
      %s324 = sadd.s32 %s323, 1
      %s325 = scalar_select %p322, %s323, %s324
      %p328 = pneg %p322
      %p329 = scmp.eq.s32.totalorder %s25, 3
      %p330 = por %p328, %p329
      %p331 = scmp.ne.s32.totalorder %s323, %s326
      %p332 = scmp.eq.s32.totalorder %s25, 0
      %p333 = por %p331, %p332
      %p334 = scmp.ne.s32.totalorder %s323, %s326
      %p335 = scmp.eq.s32.totalorder %s30, 3
      %p336 = por %p334, %p335
      %p337 = scmp.ne.s32.totalorder %s326, %s327
      %p338 = scmp.eq.s32.totalorder %s30, 0
      %p339 = por %p337, %p338
      %p340 = scmp.ne.s32.totalorder %s326, %s327
      %p341 = scmp.eq.s32.totalorder %s31, 3
      %p342 = por %p340, %p341
      %p344 = scmp.ne.s32.totalorder %s327, %s343
      %p345 = scmp.eq.s32.totalorder %s31, 0
      %p346 = por %p344, %p345
      %s347 = ssub.s32 %s33, %s40
      %p348 = scmp.eq.s32.totalorder %s347, 0
      %s350 = sadd.s32 %s349, 1
      %s351 = scalar_select %p348, %s349, %s350
      %p354 = pneg %p348
      %p355 = scmp.eq.s32.totalorder %s25, 3
      %p356 = por %p354, %p355
      %p357 = scmp.ne.s32.totalorder %s349, %s352
      %p358 = scmp.eq.s32.totalorder %s25, 0
      %p359 = por %p357, %p358
      %p360 = scmp.ne.s32.totalorder %s349, %s352
      %p361 = scmp.eq.s32.totalorder %s30, 3
      %p362 = por %p360, %p361
      %p363 = scmp.ne.s32.totalorder %s352, %s353
      %p364 = scmp.eq.s32.totalorder %s30, 0
      %p365 = por %p363, %p364
      %p366 = scmp.ne.s32.totalorder %s352, %s353
      %p367 = scmp.eq.s32.totalorder %s31, 3
      %p368 = por %p366, %p367
      %p370 = scmp.ne.s32.totalorder %s353, %s369
      %p371 = scmp.eq.s32.totalorder %s31, 0
      %p372 = por %p370, %p371
      %s373 = ssub.s32 %s33, %s40
      %p374 = scmp.eq.s32.totalorder %s373, 0
      %s376 = sadd.s32 %s375, 1
      %s377 = scalar_select %p374, %s375, %s376
      %p380 = pneg %p374
      %p381 = scmp.eq.s32.totalorder %s25, 3
      %p382 = por %p380, %p381
      %p383 = scmp.ne.s32.totalorder %s375, %s378
      %p384 = scmp.eq.s32.totalorder %s25, 0
      %p385 = por %p383, %p384
      %p386 = scmp.ne.s32.totalorder %s375, %s378
      %p387 = scmp.eq.s32.totalorder %s30, 3
      %p388 = por %p386, %p387
      %p389 = scmp.ne.s32.totalorder %s378, %s379
      %p390 = scmp.eq.s32.totalorder %s30, 0
      %p391 = por %p389, %p390
      %p392 = scmp.ne.s32.totalorder %s378, %s379
      %p393 = scmp.eq.s32.totalorder %s31, 3
      %p394 = por %p392, %p393
      %p396 = scmp.ne.s32.totalorder %s379, %s395
      %p397 = scmp.eq.s32.totalorder %s31, 0
      %p398 = por %p396, %p397
      %s399 = ssub.s32 %s33, %s40
      %p400 = scmp.eq.s32.totalorder %s399, 0
      %s402 = sadd.s32 %s401, 1
      %s403 = scalar_select %p400, %s401, %s402
      %p406 = pneg %p400
      %p407 = scmp.eq.s32.totalorder %s25, 3
      %p408 = por %p406, %p407
      %p409 = scmp.ne.s32.totalorder %s401, %s404
      %p410 = scmp.eq.s32.totalorder %s25, 0
      %p411 = por %p409, %p410
      %p412 = scmp.ne.s32.totalorder %s401, %s404
      %p413 = scmp.eq.s32.totalorder %s30, 3
      %p414 = por %p412, %p413
      %p415 = scmp.ne.s32.totalorder %s404, %s405
      %p416 = scmp.eq.s32.totalorder %s30, 0
      %p417 = por %p415, %p416
      %p418 = scmp.ne.s32.totalorder %s404, %s405
      %p419 = scmp.eq.s32.totalorder %s31, 3
      %p420 = por %p418, %p419
      %p422 = scmp.ne.s32.totalorder %s405, %s421
      %p423 = scmp.eq.s32.totalorder %s31, 0
      %p424 = por %p422, %p423
      %s425 = ssub.s32 %s33, %s40
      %p426 = scmp.eq.s32.totalorder %s425, 0
      %s428 = sadd.s32 %s427, 1
      %s429 = scalar_select %p426, %s427, %s428
      %p432 = pneg %p426
      %p433 = scmp.eq.s32.totalorder %s25, 3
      %p434 = por %p432, %p433
      %p435 = scmp.ne.s32.totalorder %s427, %s430
      %p436 = scmp.eq.s32.totalorder %s25, 0
      %p437 = por %p435, %p436
      %p438 = scmp.ne.s32.totalorder %s427, %s430
      %p439 = scmp.eq.s32.totalorder %s30, 3
      %p440 = por %p438, %p439
      %p441 = scmp.ne.s32.totalorder %s430, %s431
      %p442 = scmp.eq.s32.totalorder %s30, 0
      %p443 = por %p441, %p442
      %p444 = scmp.ne.s32.totalorder %s430, %s431
      %p445 = scmp.eq.s32.totalorder %s31, 3
      %p446 = por %p444, %p445
      %p448 = scmp.ne.s32.totalorder %s431, %s447
      %p449 = scmp.eq.s32.totalorder %s31, 0
      %p450 = por %p448, %p449
      %s451 = ssub.s32 %s32, %s44
      %p452 = scmp.eq.s32.totalorder %s451, 0
      %s454 = sadd.s32 %s453, 1
      %s455 = scalar_select %p452, %s453, %s454
      %p458 = pneg %p452
      %p459 = scmp.eq.s32.totalorder %s25, 3
      %p460 = por %p458, %p459
      %p461 = scmp.ne.s32.totalorder %s453, %s456
      %p462 = scmp.eq.s32.totalorder %s25, 0
      %p463 = por %p461, %p462
      %p464 = scmp.ne.s32.totalorder %s453, %s456
      %p465 = scmp.eq.s32.totalorder %s30, 3
      %p466 = por %p464, %p465
      %p467 = scmp.ne.s32.totalorder %s456, %s457
      %p468 = scmp.eq.s32.totalorder %s30, 0
      %p469 = por %p467, %p468
      %p470 = scmp.ne.s32.totalorder %s456, %s457
      %p471 = scmp.eq.s32.totalorder %s31, 3
      %p472 = por %p470, %p471
      %p474 = scmp.ne.s32.totalorder %s457, %s473
      %p475 = scmp.eq.s32.totalorder %s31, 0
      %p476 = por %p474, %p475
      %p477 = scmp.le.s32.totalorder 1, %s25
      %p478 = scmp.lt.s32.totalorder %s25, 5
      %p479 = pnand %p477, %p478
      %p480 = pneg %p479
      // Predicated region
      $region9: #{_lambda_.1} parent=5 // pred_check
        _
      $region10: #{_lambda_.1} parent=5 // pred_check_branch
        %482 = sbr.rel (%p479) target = $region12
      $region11: #{_lambda_.1} parent=5 // pred_region
        %s483 = ssub.s32 %s25, 1
        // Predicated region
        $region13: #{_lambda_.1} parent=11 // pred_check
          %p484 = pneg %p110
        $region14: #{_lambda_.1} parent=11 // pred_check_branch
          %486 = sbr.rel (%p484) target = $region16
        $region15: #{_lambda_.1} parent=11 // pred_region
          _
        $region16: #{_lambda_.1} parent=11 // pred_fallthru
          _
        // Predicated region
        $region17: #{_lambda_.1} parent=11 // pred_check
          %p487 = pneg %p131
        $region18: #{_lambda_.1} parent=11 // pred_check_branch
          %489 = sbr.rel (%p487) target = $region20
        $region19: #{_lambda_.1} parent=11 // pred_region
          _
        $region20: #{_lambda_.1} parent=11 // pred_fallthru
          _
      $region12: #{_lambda_.1} parent=5 // pred_fallthru
        _
      %p490 = scmp.lt.s32.totalorder %s25, 4
      // Predicated region
      $region21: #{_lambda_.1} parent=5 // pred_check
        %p491 = pneg %p490
      $region22: #{_lambda_.1} parent=5 // pred_check_branch
        %493 = sbr.rel (%p491) target = $region24
      $region23: #{_lambda_.1} parent=5 // pred_region
        // Predicated region
        $region25: #{_lambda_.1} parent=23 // pred_check
          %p494 = pneg %p57
        $region26: #{_lambda_.1} parent=23 // pred_check_branch
          %496 = sbr.rel (%p494) target = $region28
        $region27: #{_lambda_.1} parent=23 // pred_region
          %p497 = scmp.lt.s32.totalorder %s32, 1
          %s498 = scalar_select %p497, %s32, 1
          %s499 = smul.addr %s498, 8
          %s500 = scalar_lea.vmem %s0, %s499
        $region28: #{_lambda_.1} parent=23 // pred_fallthru
          _
        // Predicated region
        $region29: #{_lambda_.1} parent=23 // pred_check
          %p501 = pneg %p83
        $region30: #{_lambda_.1} parent=23 // pred_check_branch
          %503 = sbr.rel (%p501) target = $region32
        $region31: #{_lambda_.1} parent=23 // pred_region
          %p504 = scmp.lt.s32.totalorder %s32, 1
          %s505 = scalar_select %p504, %s32, 1
          %s506 = scalar_lea.vmem %s1, %s505
        $region32: #{_lambda_.1} parent=23 // pred_fallthru
          _
        // Predicated region
        $region33: #{_lambda_.1} parent=23 // pred_check
          %p507 = pneg %p151
        $region34: #{_lambda_.1} parent=23 // pred_check_branch
          %509 = sbr.rel (%p507) target = $region36
        $region35: #{_lambda_.1} parent=23 // pred_region
          %p510 = scmp.lt.s32.totalorder %s33, 1
          %s511 = scalar_select %p510, %s33, 1
          %s512 = smul.addr %s511, 4
          %s513 = smul.addr %s512, 4
          %s514 = scalar_lea.vmem %s4, %s513
        $region36: #{_lambda_.1} parent=23 // pred_fallthru
          _
        // Predicated region
        $region37: #{_lambda_.1} parent=23 // pred_check
          %p515 = pneg %p177
        $region38: #{_lambda_.1} parent=23 // pred_check_branch
          %517 = sbr.rel (%p515) target = $region40
        $region39: #{_lambda_.1} parent=23 // pred_region
          %p518 = scmp.lt.s32.totalorder %s33, 1
          %s519 = scalar_select %p518, %s33, 1
          %s520 = scalar_lea.vmem %s5, %s519
        $region40: #{_lambda_.1} parent=23 // pred_fallthru
          _
        // Predicated region
        $region41: #{_lambda_.1} parent=23 // pred_check
          %p521 = pneg %p203
        $region42: #{_lambda_.1} parent=23 // pred_check_branch
          %523 = sbr.rel (%p521) target = $region44
        $region43: #{_lambda_.1} parent=23 // pred_region
          %p524 = scmp.lt.s32.totalorder %s33, 1
          %s525 = scalar_select %p524, %s33, 1
          %s526 = smul.addr %s525, 4
          %s527 = smul.addr %s526, 4
          %s528 = scalar_lea.vmem %s6, %s527
        $region44: #{_lambda_.1} parent=23 // pred_fallthru
          _
        // Predicated region
        $region45: #{_lambda_.1} parent=23 // pred_check
          %p529 = pneg %p229
        $region46: #{_lambda_.1} parent=23 // pred_check_branch
          %531 = sbr.rel (%p529) target = $region48
        $region47: #{_lambda_.1} parent=23 // pred_region
          %p532 = scmp.lt.s32.totalorder %s33, 1
          %s533 = scalar_select %p532, %s33, 1
          %s534 = scalar_lea.vmem %s7, %s533
        $region48: #{_lambda_.1} parent=23 // pred_fallthru
          _
        // Predicated region
        $region49: #{_lambda_.1} parent=23 // pred_check
          %p535 = pneg %p255
        $region50: #{_lambda_.1} parent=23 // pred_check_branch
          %537 = sbr.rel (%p535) target = $region52
        $region51: #{_lambda_.1} parent=23 // pred_region
          %p538 = scmp.lt.s32.totalorder %s33, 1
          %s539 = scalar_select %p538, %s33, 1
          %s540 = scalar_lea.vmem %s8, %s539
        $region52: #{_lambda_.1} parent=23 // pred_fallthru
          _
        // Predicated region
        $region53: #{_lambda_.1} parent=23 // pred_check
          %p541 = pneg %p281
        $region54: #{_lambda_.1} parent=23 // pred_check_branch
          %543 = sbr.rel (%p541) target = $region56
        $region55: #{_lambda_.1} parent=23 // pred_region
          %p544 = scmp.lt.s32.totalorder %s33, 1
          %s545 = scalar_select %p544, %s33, 1
          %s546 = scalar_lea.vmem %s9, %s545
        $region56: #{_lambda_.1} parent=23 // pred_fallthru
          _
        // Predicated region
        $region57: #{_lambda_.1} parent=23 // pred_check
          %p547 = pneg %p307
        $region58: #{_lambda_.1} parent=23 // pred_check_branch
          %549 = sbr.rel (%p547) target = $region60
        $region59: #{_lambda_.1} parent=23 // pred_region
          %p550 = scmp.lt.s32.totalorder %s33, 1
          %s551 = scalar_select %p550, %s33, 1
          %s552 = smul.addr %s551, 4
          %s553 = smul.addr %s552, 4
          %s554 = scalar_lea.vmem %s10, %s553
        $region60: #{_lambda_.1} parent=23 // pred_fallthru
          _
        // Predicated region
        $region61: #{_lambda_.1} parent=23 // pred_check
          %p555 = pneg %p333
        $region62: #{_lambda_.1} parent=23 // pred_check_branch
          %557 = sbr.rel (%p555) target = $region64
        $region63: #{_lambda_.1} parent=23 // pred_region
          %p558 = scmp.lt.s32.totalorder %s33, 1
          %s559 = scalar_select %p558, %s33, 1
          %s560 = scalar_lea.vmem %s11, %s559
        $region64: #{_lambda_.1} parent=23 // pred_fallthru
          _
        // Predicated region
        $region65: #{_lambda_.1} parent=23 // pred_check
          %p561 = pneg %p359
        $region66: #{_lambda_.1} parent=23 // pred_check_branch
          %563 = sbr.rel (%p561) target = $region68
        $region67: #{_lambda_.1} parent=23 // pred_region
          %p564 = scmp.lt.s32.totalorder %s33, 1
          %s565 = scalar_select %p564, %s33, 1
          %s566 = smul.addr %s565, 8
          %s567 = smul.addr %s566, 4
          %s568 = scalar_lea.vmem %s12, %s567
        $region68: #{_lambda_.1} parent=23 // pred_fallthru
          _
        // Predicated region
        $region69: #{_lambda_.1} parent=23 // pred_check
          %p569 = pneg %p385
        $region70: #{_lambda_.1} parent=23 // pred_check_branch
          %571 = sbr.rel (%p569) target = $region72
        $region71: #{_lambda_.1} parent=23 // pred_region
          %p572 = scmp.lt.s32.totalorder %s33, 1
          %s573 = scalar_select %p572, %s33, 1
          %s574 = scalar_lea.vmem %s13, %s573
        $region72: #{_lambda_.1} parent=23 // pred_fallthru
          _
        // Predicated region
        $region73: #{_lambda_.1} parent=23 // pred_check
          %p575 = pneg %p411
        $region74: #{_lambda_.1} parent=23 // pred_check_branch
          %577 = sbr.rel (%p575) target = $region76
        $region75: #{_lambda_.1} parent=23 // pred_region
          %p578 = scmp.lt.s32.totalorder %s33, 1
          %s579 = scalar_select %p578, %s33, 1
          %s580 = scalar_lea.vmem %s14, %s579
        $region76: #{_lambda_.1} parent=23 // pred_fallthru
          _
        // Predicated region
        $region77: #{_lambda_.1} parent=23 // pred_check
          %p581 = pneg %p437
        $region78: #{_lambda_.1} parent=23 // pred_check_branch
          %583 = sbr.rel (%p581) target = $region80
        $region79: #{_lambda_.1} parent=23 // pred_region
          %p584 = scmp.lt.s32.totalorder %s33, 1
          %s585 = scalar_select %p584, %s33, 1
          %s586 = scalar_lea.vmem %s15, %s585
        $region80: #{_lambda_.1} parent=23 // pred_fallthru
          _
      $region24: #{_lambda_.1} parent=5 // pred_fallthru
        _
      %p587 = scmp.le.s32.totalorder 1, %s25
      %p588 = scmp.lt.s32.totalorder %s25, 5
      %p589 = pnand %p587, %p588
      %p590 = pneg %p589
      // Predicated region
      $region81: #{_lambda_.1} parent=5 // pred_check
        _
      $region82: #{_lambda_.1} parent=5 // pred_check_branch
        %592 = sbr.rel (%p589) target = $region84
      $region83: #{_lambda_.1} parent=5 // pred_region
        %s593 = ssub.s32 %s25, 1
        %p594 = scmp.lt.s32.totalorder %s34, 1
        %s595 = scalar_select %p594, %s34, 1
        %s596 = smul.addr %s595, 8
        %s597 = scalar_lea.vmem %s0, %s596
        %p598 = pneg %p63
        %p599 = pneg %p60
        %p600 = scmp.lt.s32.totalorder %s34, 1
        %s601 = scalar_select %p600, %s34, 1
        %s602 = scalar_lea.vmem %s1, %s601
        %p603 = pneg %p89
        %p604 = pneg %p86
        %p605 = pneg %p110
        %p606 = pneg %p107
        %p607 = pneg %p131
        %p608 = pneg %p128
        %p609 = scmp.lt.s32.totalorder %s35, 1
        %s610 = scalar_select %p609, %s35, 1
        %s611 = smul.addr %s610, 4
        %s612 = smul.addr %s611, 4
        %s613 = scalar_lea.vmem %s4, %s612
        %p614 = pneg %p157
        %p615 = pneg %p154
        %p616 = scmp.lt.s32.totalorder %s35, 1
        %s617 = scalar_select %p616, %s35, 1
        %s618 = scalar_lea.vmem %s5, %s617
        %p619 = pneg %p183
        %p620 = pneg %p180
        %p621 = scmp.lt.s32.totalorder %s35, 1
        %s622 = scalar_select %p621, %s35, 1
        %s623 = smul.addr %s622, 4
        %s624 = smul.addr %s623, 4
        %s625 = scalar_lea.vmem %s6, %s624
        %p626 = pneg %p209
        %p627 = pneg %p206
        %p628 = scmp.lt.s32.totalorder %s35, 1
        %s629 = scalar_select %p628, %s35, 1
        %s630 = scalar_lea.vmem %s7, %s629
        %p631 = pneg %p235
        %p632 = pneg %p232
        %p633 = scmp.lt.s32.totalorder %s35, 1
        %s634 = scalar_select %p633, %s35, 1
        %s635 = scalar_lea.vmem %s8, %s634
        %p636 = pneg %p261
        %p637 = pneg %p258
        %p638 = scmp.lt.s32.totalorder %s35, 1
        %s639 = scalar_select %p638, %s35, 1
        %s640 = scalar_lea.vmem %s9, %s639
        %p641 = pneg %p287
        %p642 = pneg %p284
        %p643 = scmp.lt.s32.totalorder %s35, 1
        %s644 = scalar_select %p643, %s35, 1
        %s645 = smul.addr %s644, 4
        %s646 = smul.addr %s645, 4
        %s647 = scalar_lea.vmem %s10, %s646
        %p648 = pneg %p313
        %p649 = pneg %p310
        %p650 = scmp.lt.s32.totalorder %s35, 1
        %s651 = scalar_select %p650, %s35, 1
        %s652 = scalar_lea.vmem %s11, %s651
        %p653 = pneg %p339
        %p654 = pneg %p336
        %p655 = scmp.lt.s32.totalorder %s35, 1
        %s656 = scalar_select %p655, %s35, 1
        %s657 = smul.addr %s656, 8
        %s658 = smul.addr %s657, 4
        %s659 = scalar_lea.vmem %s12, %s658
        %p660 = pneg %p365
        %p661 = pneg %p362
        %p662 = scmp.lt.s32.totalorder %s35, 1
        %s663 = scalar_select %p662, %s35, 1
        %s664 = scalar_lea.vmem %s13, %s663
        %p665 = pneg %p391
        %p666 = pneg %p388
        %p667 = scmp.lt.s32.totalorder %s35, 1
        %s668 = scalar_select %p667, %s35, 1
        %s669 = scalar_lea.vmem %s14, %s668
        %p670 = pneg %p417
        %p671 = pneg %p414
        %p672 = scmp.lt.s32.totalorder %s35, 1
        %s673 = scalar_select %p672, %s35, 1
        %s674 = scalar_lea.vmem %s15, %s673
        %p675 = pneg %p443
        %p676 = pneg %p440
        %p677 = pneg %p469
        %p678 = pneg %p466
        %s679 = sand.u32 %s456, 1
        %s680 = scalar_lea.sflag [#allocation4], %s679
        %s681 = sand.u32 %s456, 1
        %s682 = smul.addr %s681, 8
        %s683 = scalar_lea.vmem [#allocation3], %s682
        %p684 = scmp.lt.s32.totalorder %s34, 1
        %s685 = scalar_select %p684, %s34, 1
        %s686 = smul.addr %s685, 8
        %s687 = scalar_lea.vmem %s0, %s686
        %p688 = scmp.lt.s32.totalorder %s34, 1
        %s689 = scalar_select %p688, %s34, 1
        %s690 = scalar_lea.vmem %s1, %s689
        %p691 = scmp.lt.s32.totalorder %s35, 1
        %s692 = scalar_select %p691, %s35, 1
        %s693 = smul.addr %s692, 4
        %s694 = smul.addr %s693, 4
        %s695 = scalar_lea.vmem %s4, %s694
        %p696 = scmp.lt.s32.totalorder %s35, 1
        %s697 = scalar_select %p696, %s35, 1
        %s698 = scalar_lea.vmem %s5, %s697
        %p699 = scmp.lt.s32.totalorder %s35, 1
        %s700 = scalar_select %p699, %s35, 1
        %s701 = smul.addr %s700, 4
        %s702 = smul.addr %s701, 4
        %s703 = scalar_lea.vmem %s6, %s702
        %p704 = scmp.lt.s32.totalorder %s35, 1
        %s705 = scalar_select %p704, %s35, 1
        %s706 = scalar_lea.vmem %s7, %s705
        %p707 = scmp.lt.s32.totalorder %s35, 1
        %s708 = scalar_select %p707, %s35, 1
        %s709 = scalar_lea.vmem %s8, %s708
        %p710 = scmp.lt.s32.totalorder %s35, 1
        %s711 = scalar_select %p710, %s35, 1
        %s712 = scalar_lea.vmem %s9, %s711
        %p713 = scmp.lt.s32.totalorder %s35, 1
        %s714 = scalar_select %p713, %s35, 1
        %s715 = smul.addr %s714, 4
        %s716 = smul.addr %s715, 4
        %s717 = scalar_lea.vmem %s10, %s716
        %p718 = scmp.lt.s32.totalorder %s35, 1
        %s719 = scalar_select %p718, %s35, 1
        %s720 = scalar_lea.vmem %s11, %s719
        %p721 = scmp.lt.s32.totalorder %s35, 1
        %s722 = scalar_select %p721, %s35, 1
        %s723 = smul.addr %s722, 8
        %s724 = smul.addr %s723, 4
        %s725 = scalar_lea.vmem %s12, %s724
        %p726 = scmp.lt.s32.totalorder %s35, 1
        %s727 = scalar_select %p726, %s35, 1
        %s728 = scalar_lea.vmem %s13, %s727
        %p729 = scmp.lt.s32.totalorder %s35, 1
        %s730 = scalar_select %p729, %s35, 1
        %s731 = scalar_lea.vmem %s14, %s730
        %p732 = scmp.lt.s32.totalorder %s35, 1
        %s733 = scalar_select %p732, %s35, 1
        %s734 = scalar_lea.vmem %s15, %s733
        %p736 = scmp.eq.s32.totalorder %s35, 0
        // Predicated region
        $region85: #{_lambda_.1} parent=83 // pred_check
          %p737 = pneg %p736
        $region86: #{_lambda_.1} parent=83 // pred_check_branch
          %739 = sbr.rel (%p737) target = $region88
        $region87: #{_lambda_.1} parent=83 // pred_region
          %v740 = vld [vmem:[%s687] sm:$0xff]
          %v741 = vld [vmem:[%s2] sm:$0x1]
          %v742 = vld [vmem:[%s3] sm:$0x1]
          %vm743 = vcmask 261120
          %v744 = vsel %vm743, %v740, 0.0
          %745 = vadd.xlane.f32.xlu0 %v744
          %v746 = vpop.xlane.xlu0 %745
          %v747 = vrcp.pop 32.0
          %v748 = vmul.f32 %v746, %v747
          %v749 = vsub.f32 %v740, %v748
          %v750 = vmul.f32 %v749, %v749
          %v751 = vsel %vm743, %v750, 0.0
          %752 = vadd.xlane.f32.xlu0 %v751
          %v753 = vpop.xlane.xlu0 %752
          %v754 = vmul.f32 %v753, %v747
          %v755 = vadd.f32 %v754, 1e-12
          %v756 = vrsqrt.pop %v755
          %v757 = vmul.f32 %v749, %v756
          %v759 = vlaneseq
          %v760 = vshrl.u32 %v759, 7
          %v761 = vsub.s32 0, %v760
          %v762 = vrot.slane %v741, %v761
          %v764 = vmul.f32 %v757, %v762
          %v766 = vlaneseq
          %v767 = vshrl.u32 %v766, 7
          %v768 = vsub.s32 0, %v767
          %v769 = vrot.slane %v742, %v768
          %v771 = vadd.f32 %v764, %v769
          %772 = vst.msk [vmem:[#allocation2] sm:$0xff] %vm743, %v771
        $region88: #{_lambda_.1} parent=83 // pred_fallthru
          _
        %v773 = vld [vmem:[#allocation2] sm:$0xff]
        %v774 = vpack.c.bf16 %v773, %v773
        %v775 = vld [vmem:[%s695] sm:$0xf]
        %v776 = vld [vmem:[%s695 + $0x4] sm:$0xf]
        %v777 = vld [vmem:[%s695 + $0x8] sm:$0xf]
        %v778 = vld [vmem:[%s695 + $0xc] sm:$0xf]
        %v779 = vld [vmem:[%s698] sm:$0x1]
        %v781 = vlaneseq
        %v782 = vshrl.u32 %v781, 7
        %v783 = vsub.s32 0, %v782
        %v784 = vrot.slane %v779, %v783
        %v790 = vunpack.c.l.b16 %v775
        %v791 = vunpack.c.l.b16 %v776
        %v792 = vunpack.c.l.b16 %v777
        %v793 = vunpack.c.l.b16 %v778
        %v794 = vpack.c.b16 %v791, %v790
        %v795 = vpack.c.b16 %v793, %v792
        %vm798 = vcmask 261120
        %v800 = vsel %vm798, %v774, 0
        %802 = vmatprep.subr.bf16.mxu0 0
        %803 = vmatpush1.bf16.msra.mxu0 %v794
        %804 = vmatprep.subr.bf16.mxu0 0
        %805 = vmatpush1.bf16.msra.mxu0 %v795
        %806 = vmatprep.subr.bf16.mxu0 0
        %807 = vmatpush1.bf16.msra.mxu0 0
        %808 = vmatprep.subr.bf16.mxu0 0
        %809 = vmatpush1.bf16.msra.mxu0 0
        %810 = vmatprep.subr.bf16.mxu0 0
        %811 = vmatpush1.bf16.msra.mxu0 0
        %812 = vmatprep.subr.bf16.mxu0 0
        %813 = vmatpush1.bf16.msra.mxu0 0
        %814 = vmatprep.subr.bf16.mxu0 0
        %815 = vmatpush1.bf16.msra.mxu0 0
        %816 = vmatprep.subr.bf16.mxu0 0
        %817 = vmatpush1.bf16.msra.mxu0 0
        %818 = vmatprep.subr.bf16.mxu0 0
        %819 = vmatpush1.bf16.msra.mxu0 0
        %820 = vmatprep.subr.bf16.mxu0 0
        %821 = vmatpush1.bf16.msra.mxu0 0
        %822 = vmatprep.subr.bf16.mxu0 0
        %823 = vmatpush1.bf16.msra.mxu0 0
        %824 = vmatprep.subr.bf16.mxu0 0
        %825 = vmatpush1.bf16.msra.mxu0 0
        %826 = vmatprep.subr.bf16.mxu0 0
        %827 = vmatpush1.bf16.msra.mxu0 0
        %828 = vmatprep.subr.bf16.mxu0 0
        %829 = vmatpush1.bf16.msra.mxu0 0
        %830 = vmatprep.subr.bf16.mxu0 0
        %831 = vmatpush1.bf16.msra.mxu0 0
        %832 = vmatprep.subr.bf16.mxu0 0
        %833 = vmatpush1.bf16.msra.mxu0 0
        %834 = vmatprep.mubr.bf16.mxu0 0
        %835 = vmatmul.mubr.bf16.gmra.mrb[0].mxu0 %v800
        %v836 = vpop.f32.mrb[0].mxu0
        %v837 = vadd.f32 %v784, %v836
        %v838 = vpop.f32.mrb[0].mxu0
        %v839 = vpop.f32.mrb[0].mxu0
        %v840 = vpop.f32.mrb[0].mxu0
        %841 = vdwg.mxu0
        %v842 = vld [vmem:[%s690] sm:$0x1]
        %v844 = vlaneseq
        %v845 = vshrl.u32 %v844, 7
        %v846 = vsub.s32 0, %v845
        %v847 = vrot.slane %v842, %v846
        %v849 = vmul.f32 %v837, 0.25
        %v850 = vpack.c.bf16 %v849, %v849
        %v851 = vpack.c.bf16 %v837, %v837
        %853 = vrot.lane.b32.xlu0 %v851, 96
        %v854 = vpop.permute.xlu0 %853
        %vm855 = vcmask 130048
        %v857 = vsel %vm855, %v850, 0
        %v860 = vsel %vm855, %v854, 0
        %862 = vmatprep.subr.bf16.mxu0 0
        %863 = vmatpush1.bf16.xpose.msra.mxu0 %v860
        %864 = vmatprep.subr.bf16.mxu0 0
        %865 = vmatpush1.bf16.xpose.msra.mxu0 0
        %866 = vmatprep.subr.bf16.mxu0 0
        %867 = vmatpush1.bf16.xpose.msra.mxu0 0
        %868 = vmatprep.subr.bf16.mxu0 0
        %869 = vmatpush1.bf16.xpose.msra.mxu0 0
        %870 = vmatprep.subr.bf16.mxu0 0
        %871 = vmatpush1.bf16.xpose.msra.mxu0 0
        %872 = vmatprep.subr.bf16.mxu0 0
        %873 = vmatpush1.bf16.xpose.msra.mxu0 0
        %874 = vmatprep.subr.bf16.mxu0 0
        %875 = vmatpush1.bf16.xpose.msra.mxu0 0
        %876 = vmatprep.subr.bf16.mxu0 0
        %877 = vmatpush1.bf16.xpose.msra.mxu0 0
        %878 = vmatprep.subr.bf16.mxu0 0
        %879 = vmatpush1.bf16.xpose.msra.mxu0 0
        %880 = vmatprep.subr.bf16.mxu0 0
        %881 = vmatpush1.bf16.xpose.msra.mxu0 0
        %882 = vmatprep.subr.bf16.mxu0 0
        %883 = vmatpush1.bf16.xpose.msra.mxu0 0
        %884 = vmatprep.subr.bf16.mxu0 0
        %885 = vmatpush1.bf16.xpose.msra.mxu0 0
        %886 = vmatprep.subr.bf16.mxu0 0
        %887 = vmatpush1.bf16.xpose.msra.mxu0 0
        %888 = vmatprep.subr.bf16.mxu0 0
        %889 = vmatpush1.bf16.xpose.msra.mxu0 0
        %890 = vmatprep.subr.bf16.mxu0 0
        %891 = vmatpush1.bf16.xpose.msra.mxu0 0
        %892 = vmatprep.subr.bf16.mxu0 0
        %893 = vmatpush1.bf16.xpose.msra.mxu0 0
        %894 = vmatprep.mubr.bf16.mxu0 0
        %895 = vmatmul.mubr.bf16.gmra.mrb[0].mxu0 %v857
        %v896 = vpop.f32.mrb[0].mxu0
        %v897 = vadd.f32 %v847, %v896
        %v898 = vpop.f32.mrb[0].mxu0
        %v899 = vpop.f32.mrb[0].mxu0
        %v900 = vpop.f32.mrb[0].mxu0
        %901 = vdwg.mxu0
        %vm902 = vcmask 64512
        %v903 = vsel %vm902, %v897, -inf
        %904 = vmax.xlane.f32.xlu0 %v903
        %v905 = vpop.xlane.xlu0 %904
        %v906 = vsub.f32 %v897, %v905
        %v907 = vmul.f32 %v906, 1.442695
        %v908 = vpow.pop %v907
        %v909 = vsel %vm902, %v908, 0.0
        %910 = vadd.xlane.f32.xlu0 %v909
        %v911 = vpop.xlane.xlu0 %910
        %v912 = vrcp.pop %v911
        %v913 = vmul.f32 %v908, %v912
        %v914 = vpack.c.bf16 %v913, %v913
        %915 = vrot.lane.b32.xlu0 %v851, 64
        %v916 = vpop.permute.xlu0 %915
        %v918 = vsel %vm902, %v914, 0
        %vm920 = vcmask 1043456
        %v922 = vsel %vm920, %v916, 0
        %924 = vmatprep.subr.bf16.mxu0 0
        %925 = vmatpush1.bf16.msra.mxu0 %v922
        %926 = vmatprep.subr.bf16.mxu0 0
        %927 = vmatpush1.bf16.msra.mxu0 0
        %928 = vmatprep.subr.bf16.mxu0 0
        %929 = vmatpush1.bf16.msra.mxu0 0
        %930 = vmatprep.subr.bf16.mxu0 0
        %931 = vmatpush1.bf16.msra.mxu0 0
        %932 = vmatprep.subr.bf16.mxu0 0
        %933 = vmatpush1.bf16.msra.mxu0 0
        %934 = vmatprep.subr.bf16.mxu0 0
        %935 = vmatpush1.bf16.msra.mxu0 0
        %936 = vmatprep.subr.bf16.mxu0 0
        %937 = vmatpush1.bf16.msra.mxu0 0
        %938 = vmatprep.subr.bf16.mxu0 0
        %939 = vmatpush1.bf16.msra.mxu0 0
        %940 = vmatprep.subr.bf16.mxu0 0
        %941 = vmatpush1.bf16.msra.mxu0 0
        %942 = vmatprep.subr.bf16.mxu0 0
        %943 = vmatpush1.bf16.msra.mxu0 0
        %944 = vmatprep.subr.bf16.mxu0 0
        %945 = vmatpush1.bf16.msra.mxu0 0
        %946 = vmatprep.subr.bf16.mxu0 0
        %947 = vmatpush1.bf16.msra.mxu0 0
        %948 = vmatprep.subr.bf16.mxu0 0
        %949 = vmatpush1.bf16.msra.mxu0 0
        %950 = vmatprep.subr.bf16.mxu0 0
        %951 = vmatpush1.bf16.msra.mxu0 0
        %952 = vmatprep.subr.bf16.mxu0 0
        %953 = vmatpush1.bf16.msra.mxu0 0
        %954 = vmatprep.subr.bf16.mxu0 0
        %955 = vmatpush1.bf16.msra.mxu0 0
        %956 = vmatprep.mubr.bf16.mxu0 0
        %957 = vmatmul.mubr.bf16.gmra.mrb[0].mxu0 %v918
        %v958 = vpop.f32.mrb[0].mxu0
        %v959 = vadd.f32 0.0, %v958
        %v960 = vpop.f32.mrb[0].mxu0
        %v961 = vpop.f32.mrb[0].mxu0
        %v962 = vpop.f32.mrb[0].mxu0
        %963 = vdwg.mxu0
        %965 = vrot.lane.b32.xlu0 %v850, 112
        %v966 = vpop.permute.xlu0 %965
        %967 = vrot.lane.b32.xlu0 %v851, 80
        %v968 = vpop.permute.xlu0 %967
        %v970 = vsel %vm855, %v966, 0
        %v973 = vsel %vm855, %v968, 0
        %975 = vmatprep.subr.bf16.mxu0 0
        %976 = vmatpush1.bf16.xpose.msra.mxu0 %v973
        %977 = vmatprep.subr.bf16.mxu0 0
        %978 = vmatpush1.bf16.xpose.msra.mxu0 0
        %979 = vmatprep.subr.bf16.mxu0 0
        %980 = vmatpush1.bf16.xpose.msra.mxu0 0
        %981 = vmatprep.subr.bf16.mxu0 0
        %982 = vmatpush1.bf16.xpose.msra.mxu0 0
        %983 = vmatprep.subr.bf16.mxu0 0
        %984 = vmatpush1.bf16.xpose.msra.mxu0 0
        %985 = vmatprep.subr.bf16.mxu0 0
        %986 = vmatpush1.bf16.xpose.msra.mxu0 0
        %987 = vmatprep.subr.bf16.mxu0 0
        %988 = vmatpush1.bf16.xpose.msra.mxu0 0
        %989 = vmatprep.subr.bf16.mxu0 0
        %990 = vmatpush1.bf16.xpose.msra.mxu0 0
        %991 = vmatprep.subr.bf16.mxu0 0
        %992 = vmatpush1.bf16.xpose.msra.mxu0 0
        %993 = vmatprep.subr.bf16.mxu0 0
        %994 = vmatpush1.bf16.xpose.msra.mxu0 0
        %995 = vmatprep.subr.bf16.mxu0 0
        %996 = vmatpush1.bf16.xpose.msra.mxu0 0
        %997 = vmatprep.subr.bf16.mxu0 0
        %998 = vmatpush1.bf16.xpose.msra.mxu0 0
        %999 = vmatprep.subr.bf16.mxu0 0
        %1000 = vmatpush1.bf16.xpose.msra.mxu0 0
        %1001 = vmatprep.subr.bf16.mxu0 0
        %1002 = vmatpush1.bf16.xpose.msra.mxu0 0
        %1003 = vmatprep.subr.bf16.mxu0 0
        %1004 = vmatpush1.bf16.xpose.msra.mxu0 0
        %1005 = vmatprep.subr.bf16.mxu0 0
        %1006 = vmatpush1.bf16.xpose.msra.mxu0 0
        %1007 = vmatprep.mubr.bf16.mxu0 0
        %1008 = vmatmul.mubr.bf16.gmra.mrb[0].mxu0 %v970
        %v1009 = vpop.f32.mrb[0].mxu0
        %v1010 = vadd.f32 %v847, %v1009
        %v1011 = vpop.f32.mrb[0].mxu0
        %v1012 = vpop.f32.mrb[0].mxu0
        %v1013 = vpop.f32.mrb[0].mxu0
        %1014 = vdwg.mxu0
        %v1015 = vsel %vm902, %v1010, -inf
        %1016 = vmax.xlane.f32.xlu0 %v1015
        %v1017 = vpop.xlane.xlu0 %1016
        %v1018 = vsub.f32 %v1010, %v1017
        %v1019 = vmul.f32 %v1018, 1.442695
        %v1020 = vpow.pop %v1019
        %v1021 = vsel %vm902, %v1020, 0.0
        %1022 = vadd.xlane.f32.xlu0 %v1021
        %v1023 = vpop.xlane.xlu0 %1022
        %v1024 = vrcp.pop %v1023
        %v1025 = vmul.f32 %v1020, %v1024
        %v1026 = vpack.c.bf16 %v1025, %v1025
        %1027 = vrot.lane.b32.xlu0 %v851, 48
        %v1028 = vpop.permute.xlu0 %1027
        %v1030 = vsel %vm902, %v1026, 0
        %v1033 = vsel %vm920, %v1028, 0
        %1035 = vmatprep.subr.bf16.mxu0 0
        %1036 = vmatpush1.bf16.msra.mxu0 %v1033
        %1037 = vmatprep.subr.bf16.mxu0 0
        %1038 = vmatpush1.bf16.msra.mxu0 0
        %1039 = vmatprep.subr.bf16.mxu0 0
        %1040 = vmatpush1.bf16.msra.mxu0 0
        %1041 = vmatprep.subr.bf16.mxu0 0
        %1042 = vmatpush1.bf16.msra.mxu0 0
        %1043 = vmatprep.subr.bf16.mxu0 0
        %1044 = vmatpush1.bf16.msra.mxu0 0
        %1045 = vmatprep.subr.bf16.mxu0 0
        %1046 = vmatpush1.bf16.msra.mxu0 0
        %1047 = vmatprep.subr.bf16.mxu0 0
        %1048 = vmatpush1.bf16.msra.mxu0 0
        %1049 = vmatprep.subr.bf16.mxu0 0
        %1050 = vmatpush1.bf16.msra.mxu0 0
        %1051 = vmatprep.subr.bf16.mxu0 0
        %1052 = vmatpush1.bf16.msra.mxu0 0
        %1053 = vmatprep.subr.bf16.mxu0 0
        %1054 = vmatpush1.bf16.msra.mxu0 0
        %1055 = vmatprep.subr.bf16.mxu0 0
        %1056 = vmatpush1.bf16.msra.mxu0 0
        %1057 = vmatprep.subr.bf16.mxu0 0
        %1058 = vmatpush1.bf16.msra.mxu0 0
        %1059 = vmatprep.subr.bf16.mxu0 0
        %1060 = vmatpush1.bf16.msra.mxu0 0
        %1061 = vmatprep.subr.bf16.mxu0 0
        %1062 = vmatpush1.bf16.msra.mxu0 0
        %1063 = vmatprep.subr.bf16.mxu0 0
        %1064 = vmatpush1.bf16.msra.mxu0 0
        %1065 = vmatprep.subr.bf16.mxu0 0
        %1066 = vmatpush1.bf16.msra.mxu0 0
        %1067 = vmatprep.mubr.bf16.mxu0 0
        %1068 = vmatmul.mubr.bf16.gmra.mrb[0].mxu0 %v1030
        %v1069 = vpop.f32.mrb[0].mxu0
        %v1070 = vadd.f32 0.0, %v1069
        %v1071 = vpop.f32.mrb[0].mxu0
        %v1072 = vpop.f32.mrb[0].mxu0
        %v1073 = vpop.f32.mrb[0].mxu0
        %1074 = vdwg.mxu0
        %1076 = vrot.lane.b32.xlu0 %v1070, 16
        %v1077 = vpop.permute.xlu0 %1076
        %v1079 = vsel %vm855, %v959, %v1077
        %v1080 = vpack.c.bf16 %v1079, %v1079
        %v1081 = vld [vmem:[%s703] sm:$0xf]
        %v1082 = vld [vmem:[%s703 + $0x4] sm:$0xf]
        %v1083 = vld [vmem:[%s703 + $0x8] sm:$0xf]
        %v1084 = vld [vmem:[%s703 + $0xc] sm:$0xf]
        %v1085 = vld [vmem:[%s706] sm:$0x1]
        %v1087 = vlaneseq
        %v1088 = vshrl.u32 %v1087, 7
        %v1089 = vsub.s32 0, %v1088
        %v1090 = vrot.slane %v1085, %v1089
        %v1096 = vunpack.c.l.b16 %v1081
        %v1097 = vunpack.c.l.b16 %v1082
        %v1098 = vunpack.c.l.b16 %v1083
        %v1099 = vunpack.c.l.b16 %v1084
        %v1100 = vpack.c.b16 %v1097, %v1096
        %v1101 = vpack.c.b16 %v1099, %v1098
        %v1105 = vsel %vm798, %v1080, 0
        %1107 = vmatprep.subr.bf16.mxu0 0
        %1108 = vmatpush1.bf16.msra.mxu0 %v1100
        %1109 = vmatprep.subr.bf16.mxu0 0
        %1110 = vmatpush1.bf16.msra.mxu0 %v1101
        %1111 = vmatprep.subr.bf16.mxu0 0
        %1112 = vmatpush1.bf16.msra.mxu0 0
        %1113 = vmatprep.subr.bf16.mxu0 0
        %1114 = vmatpush1.bf16.msra.mxu0 0
        %1115 = vmatprep.subr.bf16.mxu0 0
        %1116 = vmatpush1.bf16.msra.mxu0 0
        %1117 = vmatprep.subr.bf16.mxu0 0
        %1118 = vmatpush1.bf16.msra.mxu0 0
        %1119 = vmatprep.subr.bf16.mxu0 0
        %1120 = vmatpush1.bf16.msra.mxu0 0
        %1121 = vmatprep.subr.bf16.mxu0 0
        %1122 = vmatpush1.bf16.msra.mxu0 0
        %1123 = vmatprep.subr.bf16.mxu0 0
        %1124 = vmatpush1.bf16.msra.mxu0 0
        %1125 = vmatprep.subr.bf16.mxu0 0
        %1126 = vmatpush1.bf16.msra.mxu0 0
        %1127 = vmatprep.subr.bf16.mxu0 0
        %1128 = vmatpush1.bf16.msra.mxu0 0
        %1129 = vmatprep.subr.bf16.mxu0 0
        %1130 = vmatpush1.bf16.msra.mxu0 0
        %1131 = vmatprep.subr.bf16.mxu0 0
        %1132 = vmatpush1.bf16.msra.mxu0 0
        %1133 = vmatprep.subr.bf16.mxu0 0
        %1134 = vmatpush1.bf16.msra.mxu0 0
        %1135 = vmatprep.subr.bf16.mxu0 0
        %1136 = vmatpush1.bf16.msra.mxu0 0
        %1137 = vmatprep.subr.bf16.mxu0 0
        %1138 = vmatpush1.bf16.msra.mxu0 0
        %1139 = vmatprep.mubr.bf16.mxu0 0
        %1140 = vmatmul.mubr.bf16.gmra.mrb[0].mxu0 %v1105
        %v1141 = vpop.f32.mrb[0].mxu0
        %v1142 = vadd.f32 %v1090, %v1141
        %v1143 = vpop.f32.mrb[0].mxu0
        %v1144 = vpop.f32.mrb[0].mxu0
        %v1145 = vpop.f32.mrb[0].mxu0
        %1146 = vdwg.mxu0
        %v1147 = vadd.f32 %v1142, %v773
        %v1148 = vld [vmem:[%s709] sm:$0x1]
        %v1149 = vld [vmem:[%s712] sm:$0x1]
        %v1150 = vsel %vm798, %v1147, 0.0
        %1151 = vadd.xlane.f32.xlu0 %v1150
        %v1152 = vpop.xlane.xlu0 %1151
        %v1153 = vrcp.pop 32.0
        %v1154 = vmul.f32 %v1152, %v1153
        %v1155 = vsub.f32 %v1147, %v1154
        %v1156 = vmul.f32 %v1155, %v1155
        %v1157 = vsel %vm798, %v1156, 0.0
        %1158 = vadd.xlane.f32.xlu0 %v1157
        %v1159 = vpop.xlane.xlu0 %1158
        %v1160 = vmul.f32 %v1159, %v1153
        %v1161 = vadd.f32 %v1160, 1e-12
        %v1162 = vrsqrt.pop %v1161
        %v1163 = vmul.f32 %v1155, %v1162
        %v1165 = vlaneseq
        %v1166 = vshrl.u32 %v1165, 7
        %v1167 = vsub.s32 0, %v1166
        %v1168 = vrot.slane %v1148, %v1167
        %v1170 = vmul.f32 %v1163, %v1168
        %v1172 = vlaneseq
        %v1173 = vshrl.u32 %v1172, 7
        %v1174 = vsub.s32 0, %v1173
        %v1175 = vrot.slane %v1149, %v1174
        %v1177 = vadd.f32 %v1170, %v1175
        %v1178 = vpack.c.bf16 %v1177, %v1177
        %v1179 = vld [vmem:[%s717] sm:$0xf]
        %v1180 = vld [vmem:[%s717 + $0x4] sm:$0xf]
        %v1181 = vld [vmem:[%s717 + $0x8] sm:$0xf]
        %v1182 = vld [vmem:[%s717 + $0xc] sm:$0xf]
        %v1183 = vld [vmem:[%s720] sm:$0x1]
        %v1185 = vlaneseq
        %v1186 = vshrl.u32 %v1185, 7
        %v1187 = vsub.s32 0, %v1186
        %v1188 = vrot.slane %v1183, %v1187
        %v1194 = vunpack.c.l.b16 %v1179
        %v1195 = vunpack.c.l.b16 %v1180
        %v1196 = vunpack.c.l.b16 %v1181
        %v1197 = vunpack.c.l.b16 %v1182
        %v1198 = vpack.c.b16 %v1195, %v1194
        %v1199 = vpack.c.b16 %v1197, %v1196
        %v1203 = vsel %vm798, %v1178, 0
        %1205 = vmatprep.subr.bf16.mxu0 0
        %1206 = vmatpush1.bf16.msra.mxu0 %v1198
        %1207 = vmatprep.subr.bf16.mxu0 0
        %1208 = vmatpush1.bf16.msra.mxu0 %v1199
        %1209 = vmatprep.subr.bf16.mxu0 0
        %1210 = vmatpush1.bf16.msra.mxu0 0
        %1211 = vmatprep.subr.bf16.mxu0 0
        %1212 = vmatpush1.bf16.msra.mxu0 0
        %1213 = vmatprep.subr.bf16.mxu0 0
        %1214 = vmatpush1.bf16.msra.mxu0 0
        %1215 = vmatprep.subr.bf16.mxu0 0
        %1216 = vmatpush1.bf16.msra.mxu0 0
        %1217 = vmatprep.subr.bf16.mxu0 0
        %1218 = vmatpush1.bf16.msra.mxu0 0
        %1219 = vmatprep.subr.bf16.mxu0 0
        %1220 = vmatpush1.bf16.msra.mxu0 0
        %1221 = vmatprep.subr.bf16.mxu0 0
        %1222 = vmatpush1.bf16.msra.mxu0 0
        %1223 = vmatprep.subr.bf16.mxu0 0
        %1224 = vmatpush1.bf16.msra.mxu0 0
        %1225 = vmatprep.subr.bf16.mxu0 0
        %1226 = vmatpush1.bf16.msra.mxu0 0
        %1227 = vmatprep.subr.bf16.mxu0 0
        %1228 = vmatpush1.bf16.msra.mxu0 0
        %1229 = vmatprep.subr.bf16.mxu0 0
        %1230 = vmatpush1.bf16.msra.mxu0 0
        %1231 = vmatprep.subr.bf16.mxu0 0
        %1232 = vmatpush1.bf16.msra.mxu0 0
        %1233 = vmatprep.subr.bf16.mxu0 0
        %1234 = vmatpush1.bf16.msra.mxu0 0
        %1235 = vmatprep.subr.bf16.mxu0 0
        %1236 = vmatpush1.bf16.msra.mxu0 0
        %1237 = vmatprep.mubr.bf16.mxu0 0
        %1238 = vmatmul.mubr.bf16.gmra.mrb[0].mxu0 %v1203
        %v1239 = vpop.f32.mrb[0].mxu0
        %v1240 = vadd.f32 %v1188, %v1239
        %v1241 = vpop.f32.mrb[0].mxu0
        %v1242 = vpop.f32.mrb[0].mxu0
        %v1243 = vpop.f32.mrb[0].mxu0
        %1244 = vdwg.mxu0
        %v1245 = vmul.f32 %v1240, 0.5
        %v1246 = vmul.f32 %v1240, 0.044715
        %v1247 = vmul.f32 %v1246, %v1240
        %v1248 = vmul.f32 %v1247, %v1240
        %v1249 = vadd.f32 %v1240, %v1248
        %v1250 = vmul.f32 %v1249, 0.7978846
        %v1251 = vtanh.pop %v1250
        %v1252 = vadd.f32 %v1251, 1.0
        %v1253 = vmul.f32 %v1245, %v1252
        %v1254 = vpack.c.bf16 %v1253, %v1253
        %v1255 = vld [vmem:[%s725] sm:$0xf]
        %v1256 = vld [vmem:[%s725 + $0x4] sm:$0xf]
        %v1257 = vld [vmem:[%s725 + $0x8] sm:$0xf]
        %v1258 = vld [vmem:[%s725 + $0xc] sm:$0xf]
        %v1259 = vld [vmem:[%s725 + $0x10] sm:$0xf]
        %v1260 = vld [vmem:[%s725 + $0x14] sm:$0xf]
        %v1261 = vld [vmem:[%s725 + $0x18] sm:$0xf]
        %v1262 = vld [vmem:[%s725 + $0x1c] sm:$0xf]
        %v1263 = vld [vmem:[%s728] sm:$0x1]
        %v1265 = vlaneseq
        %v1266 = vshrl.u32 %v1265, 7
        %v1267 = vsub.s32 0, %v1266
        %v1268 = vrot.slane %v1263, %v1267
        %v1278 = vunpack.c.l.b16 %v1255
        %v1279 = vunpack.c.l.b16 %v1256
        %v1280 = vunpack.c.l.b16 %v1257
        %v1281 = vunpack.c.l.b16 %v1258
        %v1282 = vunpack.c.l.b16 %v1259
        %v1283 = vunpack.c.l.b16 %v1260
        %v1284 = vunpack.c.l.b16 %v1261
        %v1285 = vunpack.c.l.b16 %v1262
        %v1286 = vpack.c.b16 %v1279, %v1278
        %v1287 = vpack.c.b16 %v1281, %v1280
        %v1288 = vpack.c.b16 %v1283, %v1282
        %v1289 = vpack.c.b16 %v1285, %v1284
        %vm1294 = vcmask 523264
        %v1296 = vsel %vm1294, %v1254, 0
        %1298 = vmatprep.subr.bf16.mxu0 0
        %1299 = vmatpush1.bf16.msra.mxu0 %v1286
        %1300 = vmatprep.subr.bf16.mxu0 0
        %1301 = vmatpush1.bf16.msra.mxu0 %v1287
        %1302 = vmatprep.subr.bf16.mxu0 0
        %1303 = vmatpush1.bf16.msra.mxu0 %v1288
        %1304 = vmatprep.subr.bf16.mxu0 0
        %1305 = vmatpush1.bf16.msra.mxu0 %v1289
        %1306 = vmatprep.subr.bf16.mxu0 0
        %1307 = vmatpush1.bf16.msra.mxu0 0
        %1308 = vmatprep.subr.bf16.mxu0 0
        %1309 = vmatpush1.bf16.msra.mxu0 0
        %1310 = vmatprep.subr.bf16.mxu0 0
        %1311 = vmatpush1.bf16.msra.mxu0 0
        %1312 = vmatprep.subr.bf16.mxu0 0
        %1313 = vmatpush1.bf16.msra.mxu0 0
        %1314 = vmatprep.subr.bf16.mxu0 0
        %1315 = vmatpush1.bf16.msra.mxu0 0
        %1316 = vmatprep.subr.bf16.mxu0 0
        %1317 = vmatpush1.bf16.msra.mxu0 0
        %1318 = vmatprep.subr.bf16.mxu0 0
        %1319 = vmatpush1.bf16.msra.mxu0 0
        %1320 = vmatprep.subr.bf16.mxu0 0
        %1321 = vmatpush1.bf16.msra.mxu0 0
        %1322 = vmatprep.subr.bf16.mxu0 0
        %1323 = vmatpush1.bf16.msra.mxu0 0
        %1324 = vmatprep.subr.bf16.mxu0 0
        %1325 = vmatpush1.bf16.msra.mxu0 0
        %1326 = vmatprep.subr.bf16.mxu0 0
        %1327 = vmatpush1.bf16.msra.mxu0 0
        %1328 = vmatprep.subr.bf16.mxu0 0
        %1329 = vmatpush1.bf16.msra.mxu0 0
        %1330 = vmatprep.mubr.bf16.mxu0 0
        %1331 = vmatmul.mubr.bf16.gmra.mrb[0].mxu0 %v1296
        %v1332 = vpop.f32.mrb[0].mxu0
        %v1333 = vadd.f32 %v1268, %v1332
        %v1334 = vpop.f32.mrb[0].mxu0
        %v1335 = vpop.f32.mrb[0].mxu0
        %v1336 = vpop.f32.mrb[0].mxu0
        %1337 = vdwg.mxu0
        %v1338 = vadd.f32 %v1333, %v1177
        %v1339 = vld [vmem:[%s731] sm:$0x1]
        %v1340 = vld [vmem:[%s734] sm:$0x1]
        %v1341 = vsel %vm798, %v1338, 0.0
        %1342 = vadd.xlane.f32.xlu0 %v1341
        %v1343 = vpop.xlane.xlu0 %1342
        %v1344 = vmul.f32 %v1343, %v1153
        %v1345 = vsub.f32 %v1338, %v1344
        %v1346 = vmul.f32 %v1345, %v1345
        %v1347 = vsel %vm798, %v1346, 0.0
        %1348 = vadd.xlane.f32.xlu0 %v1347
        %v1349 = vpop.xlane.xlu0 %1348
        %v1350 = vmul.f32 %v1349, %v1153
        %v1351 = vadd.f32 %v1350, 1e-12
        %v1352 = vrsqrt.pop %v1351
        %v1353 = vmul.f32 %v1345, %v1352
        %v1355 = vlaneseq
        %v1356 = vshrl.u32 %v1355, 7
        %v1357 = vsub.s32 0, %v1356
        %v1358 = vrot.slane %v1339, %v1357
        %v1360 = vmul.f32 %v1353, %v1358
        %v1362 = vlaneseq
        %v1363 = vshrl.u32 %v1362, 7
        %v1364 = vsub.s32 0, %v1363
        %v1365 = vrot.slane %v1340, %v1364
        %v1367 = vadd.f32 %v1360, %v1365
        %1368 = vst.msk [vmem:[#allocation2] sm:$0xff] %vm798, %v1367
        %p1369 = scmp.eq.s32.totalorder %s35, 1
        // Predicated region
        $region89: #{_lambda_.1} parent=83 // pred_check
          %p1370 = pneg %p1369
        $region90: #{_lambda_.1} parent=83 // pred_check_branch
          %1372 = sbr.rel (%p1370) target = $region92
        $region91: #{_lambda_.1} parent=83 // pred_region
          %1373 = vst.msk [vmem:[%s683] sm:$0xff] %vm798, %v1367
        $region92: #{_lambda_.1} parent=83 // pred_fallthru
          _
        %s1374 = sand.u32 %s456, 1
        %s1375 = scalar_lea.sflag [#allocation4], %s1374
        %s1376 = sand.u32 %s456, 1
        %s1377 = smul.addr %s1376, 8
        %s1378 = scalar_lea.vmem [#allocation3], %s1377
        // Predicated region
        $region93: #{_lambda_.1} parent=83 // pred_check
          %p1379 = pneg %p466
        $region94: #{_lambda_.1} parent=83 // pred_check_branch
          %1381 = sbr.rel (%p1379) target = $region96
        $region95: #{_lambda_.1} parent=83 // pred_region
          %s1383 = ssub.s32 128, 128
          %1384 = vsyncadd %s1375, %s1383
          %s1385 = smul.addr %s34, 128
          %s1386 = scalar_lea.hbm %s16, %s1385
          %s1388 = sshll.u32 %s1378, 4
          %s1389 = int_to_ptr.vmem [resolvable:$true] %s1388
          %1391 = dma.vmem_to_hbm [thread:$0]  %s1389, 128, %s1386, %s1375
        $region96: #{_lambda_.1} parent=83 // pred_fallthru
          _
      $region84: #{_lambda_.1} parent=5 // pred_fallthru
        _
      %p1392 = scmp.le.s32.totalorder 2, %s25
      // Predicated region
      $region97: #{_lambda_.1} parent=5 // pred_check
        %p1393 = pneg %p1392
      $region98: #{_lambda_.1} parent=5 // pred_check_branch
        %1395 = sbr.rel (%p1393) target = $region100
      $region99: #{_lambda_.1} parent=5 // pred_region
        %s1396 = ssub.s32 %s25, 2
        // Predicated region
        $region101: #{_lambda_.1} parent=99 // pred_check
          %p1397 = pneg %p472
        $region102: #{_lambda_.1} parent=99 // pred_check_branch
          %1399 = sbr.rel (%p1397) target = $region104
        $region103: #{_lambda_.1} parent=99 // pred_region
          %s1400 = sand.u32 %s457, 1
          %s1401 = scalar_lea.sflag [#allocation4], %s1400
          %s1402 = sand.u32 %s457, 1
          %s1403 = smul.addr %s1402, 8
          %s1404 = scalar_lea.vmem [#allocation3], %s1403
          %1405 = dma.done %s1401, 128
        $region104: #{_lambda_.1} parent=99 // pred_fallthru
          _
      $region100: #{_lambda_.1} parent=5 // pred_fallthru
        _
    $region6: #{_lambda_.1} parent=1 // loop_footer
      %s29 = sadd.s32 1, %s25
    $region7: #{_lambda_.1} parent=1 // loop_footer_branch
      %24 = sbr.rel target = $region3
    $region8: #{_lambda_.1} parent=1 // loop_exit
      _
    %1406 = vsyncpa [#allocation4], 1
    %s1407 = scalar_lea.sflag [#allocation4], 1
    %1408 = vsyncpa %s1407, 1

</llo_original>
